<compile_context>
chip_gen: v7x
topology: tpu7x:2x2x1
jax: 0.10.0
libtpu: 0.0.40
codegen_flags: <defaults>
</compile_context>

<pallas_src>
import functools

import jax
import jax.numpy as jnp
from jax.experimental import pallas as pl
from jax.experimental.pallas import tpu as pltpu

INPUT_SIZE = 784
H1, H2, H3 = 256, 128, 64

PADDED_OUT = 128   # lane-dense class dimension for the output store
NEG_BIG = -1e30    # padded-class bias: exp(NEG_BIG - m) == 0 in f32
SUBLANE = 16       # bf16 sublane packing -> batch tiles are multiples of 16


def _round_up(n, m):
    return ((n + m - 1) // m) * m


def _pick_tile(B, batch_tile):
    """Batch tile: multiple of 16, >=2 grid steps when possible (v7x 2 TCs),
    and prefer a tile that divides the rounded batch (no batch-pad copy)."""
    B_r = _round_up(B, SUBLANE)
    t = _round_up(max(SUBLANE, min(batch_tile, B_r)), SUBLANE)
    if B_r >= 2 * SUBLANE:
        t = min(t, _round_up(-(-B_r // 2), SUBLANE))
    cand = t
    while cand >= SUBLANE and 2 * cand >= t:   # never shrink by more than 2x
        if B_r % cand == 0:
            return cand
        cand -= SUBLANE
    return t


def mlp_kernel(x_ref, w1_ref, b1_ref, w2_ref, b2_ref, w3_ref, b3_ref,
               w4_ref, b4_ref, o_ref):
    # One batch tile: four bf16 MXU matmuls (f32 accumulation) + f32 ReLUs +
    # f32 log_softmax epilogue, fully VMEM-resident. Weights are grid-resident.
    h = jnp.dot(x_ref[...], w1_ref[...],
                preferred_element_type=jnp.float32) + b1_ref[...]
    h = jnp.maximum(h, 0.0)

    h = jnp.dot(h.astype(jnp.bfloat16), w2_ref[...],
                preferred_element_type=jnp.float32) + b2_ref[...]
    h = jnp.maximum(h, 0.0)

    h = jnp.dot(h.astype(jnp.bfloat16), w3_ref[...],
                preferred_element_type=jnp.float32) + b3_ref[...]
    h = jnp.maximum(h, 0.0)

    z = jnp.dot(h.astype(jnp.bfloat16), w4_ref[...],
                preferred_element_type=jnp.float32) + b4_ref[...]

    # Numerically stable log_softmax over the (padded, lane-dense) class dim.
    # Padded classes carry a -1e30 bias -> contribute exactly 0 to the sum and
    # never win the max, so real-class log-probs are unchanged.
    m = jnp.max(z, axis=-1, keepdims=True)
    s = z - m
    lse = jnp.log(jnp.sum(jnp.exp(s), axis=-1, keepdims=True))
    o_ref[...] = (s - lse).astype(o_ref.dtype)


def prepare_params(params):
    """One-time (init-path) prep: pad the output layer to a lane-dense 128
    class dimension and pre-cast weights to bf16. Biases stay f32."""
    w1, b1, w2, b2, w3, b3, w4, b4 = params
    out_size = w4.shape[1]
    w4_p = jnp.pad(w4, ((0, 0), (0, PADDED_OUT - out_size)))
    b4_p = jnp.pad(b4, ((0, 0), (0, PADDED_OUT - out_size)),
                   constant_values=NEG_BIG)
    bf = lambda w: w.astype(jnp.bfloat16)
    f32 = lambda b: b.astype(jnp.float32)
    prepared = (bf(w1), f32(b1), bf(w2), f32(b2),
                bf(w3), f32(b3), bf(w4_p), f32(b4_p))
    return prepared, out_size


@functools.partial(jax.jit, static_argnames=("out_size", "batch_tile"))
def mlp_forward(x, prepared, *, out_size, batch_tile=512):
    if x.ndim != 2:
        raise ValueError("Expected input to a 2D tensor")
    B, F = x.shape
    if F != INPUT_SIZE:
        raise ValueError("Expected each sample to have shape 784 input values")
    w1, b1, w2, b2, w3, b3, w4, b4 = prepared

    # bf16 x halves the dominant HBM read inside the kernel (f32 accumulation
    # is kept on the MXU); output stays f32.
    x_b = x.astype(jnp.bfloat16)

    tile = _pick_tile(B, batch_tile)
    B_pad = _round_up(B, tile)
    if B_pad != B:                       # only emitted when truly needed
        x_b = jnp.pad(x_b, ((0, B_pad - B), (0, 0)))

    full = lambda arr: pl.BlockSpec(arr.shape, lambda i: (0, 0))

    out = pl.pallas_call(
        mlp_kernel,
        out_shape=jax.ShapeDtypeStruct((B_pad, PADDED_OUT), jnp.float32),
        grid_spec=pltpu.PrefetchScalarGridSpec(
            num_scalar_prefetch=0,
            grid=(B_pad // tile,),
            in_specs=[
                # 784 == full last dim of x, so no lane-padding is required.
                pl.BlockSpec((tile, INPUT_SIZE), lambda i: (i, 0)),
                full(w1), full(b1),
                full(w2), full(b2),
                full(w3), full(b3),
                full(w4), full(b4),
            ],
            out_specs=pl.BlockSpec((tile, PADDED_OUT), lambda i: (i, 0)),
        ),
        compiler_params=pltpu.CompilerParams(
            dimension_semantics=("parallel",)),
    )(x_b, w1, b1, w2, b2, w3, b3, w4, b4)

    # Drop batch padding and the padded class columns.
    return out[:B, :out_size]


def init_linear(key, fan_in, fan_out):
    # Deterministic init mimicking nn.Linear's uniform(-1/sqrt(fan_in), +1/sqrt(fan_in)).
    kw, kb = jax.random.split(key)
    bound = 1.0 / jnp.sqrt(fan_in)
    w = jax.random.uniform(kw, (fan_in, fan_out), jnp.float32, -bound, bound)
    b = jax.random.uniform(kb, (1, fan_out), jnp.float32, -bound, bound)
    return w, b


def reference_forward(x, params):
    # Reference with the same bf16-rounded matmul inputs (f32 accumulation),
    # matching what the MXU computes in the kernel.
    w1, b1, w2, b2, w3, b3, w4, b4 = params
    r = lambda a: a.astype(jnp.bfloat16).astype(jnp.float32)
    h = jax.nn.relu(r(x) @ r(w1) + b1)
    h = jax.nn.relu(r(h) @ r(w2) + b2)
    h = jax.nn.relu(r(h) @ r(w3) + b3)
    z = r(h) @ r(w4) + b4
    return jax.nn.log_softmax(z, axis=1)


if __name__ == "__main__":
    key = jax.random.PRNGKey(0)
    k_x, k1, k2, k3, k4 = jax.random.split(key, 5)

    batch = 200          # deliberately not a tile multiple -> exercises padding
    output_size = 10

    x = jax.random.normal(k_x, (batch, INPUT_SIZE), jnp.float32)

    w1, b1 = init_linear(k1, INPUT_SIZE, H1)
    w2, b2 = init_linear(k2, H1, H2)
    w3, b3 = init_linear(k3, H2, H3)
    w4, b4 = init_linear(k4, H3, output_size)
    params = (w1, b1, w2, b2, w3, b3, w4, b4)

    # One-time prep: pad output layer to 128 classes, pre-cast weights to bf16.
    prepared, out_size = prepare_params(params)

    # batch=200 -> tile=112, grid=2 (shards across both TensorCores on v7x).
    out = mlp_forward(x, prepared, out_size=out_size, batch_tile=512)
    out = jax.block_until_ready(out)

    ref = reference_forward(x, params)
    assert out.shape == (batch, output_size)
    assert jnp.allclose(out, ref, atol=1e-3, rtol=1e-3), (
        float(jnp.max(jnp.abs(out - ref))))

    print("KERNEL_OK")
</pallas_src>

<mosaic_0001>
module attributes {stable_mosaic.version = 11 : i64} {
  func.func @mlp_kernel(%arg0: i32, %arg1: memref<112x784xbf16, #tpu.memory_space<vmem>>, %arg2: memref<784x256xbf16, #tpu.memory_space<vmem>>, %arg3: memref<1x256xf32, #tpu.memory_space<vmem>>, %arg4: memref<256x128xbf16, #tpu.memory_space<vmem>>, %arg5: memref<1x128xf32, #tpu.memory_space<vmem>>, %arg6: memref<128x64xbf16, #tpu.memory_space<vmem>>, %arg7: memref<1x64xf32, #tpu.memory_space<vmem>>, %arg8: memref<64x128xbf16, #tpu.memory_space<vmem>>, %arg9: memref<1x128xf32, #tpu.memory_space<vmem>>, %arg10: memref<112x128xf32, #tpu.memory_space<vmem>>) attributes {dimension_semantics = [#tpu.dimension_semantics<parallel>], iteration_bounds = array<i64: 2>, scalar_prefetch = 0 : i64, scratch_operands = 0 : i64, tpu.core_type = #tpu.core_type<tc>, window_params = [{transform_indices = @transform_0, window_bounds = array<i64: 112, 784>}, {pipeline_mode = #tpu.pipeline_mode<synchronous>, transform_indices = @transform_1, window_bounds = array<i64: 784, 256>}, {pipeline_mode = #tpu.pipeline_mode<synchronous>, transform_indices = @transform_2, window_bounds = array<i64: 1, 256>}, {pipeline_mode = #tpu.pipeline_mode<synchronous>, transform_indices = @transform_3, window_bounds = array<i64: 256, 128>}, {pipeline_mode = #tpu.pipeline_mode<synchronous>, transform_indices = @transform_4, window_bounds = array<i64: 1, 128>}, {pipeline_mode = #tpu.pipeline_mode<synchronous>, transform_indices = @transform_5, window_bounds = array<i64: 128, 64>}, {pipeline_mode = #tpu.pipeline_mode<synchronous>, transform_indices = @transform_6, window_bounds = array<i64: 1, 64>}, {pipeline_mode = #tpu.pipeline_mode<synchronous>, transform_indices = @transform_7, window_bounds = array<i64: 64, 128>}, {pipeline_mode = #tpu.pipeline_mode<synchronous>, transform_indices = @transform_8, window_bounds = array<i64: 1, 128>}, {transform_indices = @transform_9, window_bounds = array<i64: 112, 128>}]} {
    %c0 = arith.constant 0 : index
    %c0_0 = arith.constant 0 : index
    %0 = vector.load %arg1[%c0, %c0_0] : memref<112x784xbf16, #tpu.memory_space<vmem>>, vector<112x784xbf16>
    %c0_1 = arith.constant 0 : index
    %c0_2 = arith.constant 0 : index
    %1 = vector.load %arg2[%c0_1, %c0_2] : memref<784x256xbf16, #tpu.memory_space<vmem>>, vector<784x256xbf16>
    %cst = arith.constant dense<0.000000e+00> : vector<112x256xf32>
    %2 = tpu.matmul %0, %1, %cst {dimension_numbers = #tpu.dot_dimension_numbers<[1], [0], [0], [1], [0, 0, 1, 1], [], []>} : vector<112x784xbf16>, vector<784x256xbf16>, vector<112x256xf32> -> vector<112x256xf32>
    %c0_3 = arith.constant 0 : index
    %c0_4 = arith.constant 0 : index
    %3 = vector.load %arg3[%c0_3, %c0_4] : memref<1x256xf32, #tpu.memory_space<vmem>>, vector<1x256xf32>
    %4 = vector.broadcast %3 : vector<1x256xf32> to vector<112x256xf32>
    %5 = arith.addf %2, %4 : vector<112x256xf32>
    %cst_5 = arith.constant 0.000000e+00 : f32
    %6 = vector.broadcast %cst_5 : f32 to vector<112x256xf32>
    %7 = arith.maximumf %5, %6 : vector<112x256xf32>
    %8 = arith.truncf %7 : vector<112x256xf32> to vector<112x256xbf16>
    %c0_6 = arith.constant 0 : index
    %c0_7 = arith.constant 0 : index
    %9 = vector.load %arg4[%c0_6, %c0_7] : memref<256x128xbf16, #tpu.memory_space<vmem>>, vector<256x128xbf16>
    %cst_8 = arith.constant dense<0.000000e+00> : vector<112x128xf32>
    %10 = tpu.matmul %8, %9, %cst_8 {dimension_numbers = #tpu.dot_dimension_numbers<[1], [0], [0], [1], [0, 0, 1, 1], [], []>} : vector<112x256xbf16>, vector<256x128xbf16>, vector<112x128xf32> -> vector<112x128xf32>
    %c0_9 = arith.constant 0 : index
    %c0_10 = arith.constant 0 : index
    %11 = vector.load %arg5[%c0_9, %c0_10] : memref<1x128xf32, #tpu.memory_space<vmem>>, vector<1x128xf32>
    %12 = vector.broadcast %11 : vector<1x128xf32> to vector<112x128xf32>
    %13 = arith.addf %10, %12 : vector<112x128xf32>
    %cst_11 = arith.constant 0.000000e+00 : f32
    %14 = vector.broadcast %cst_11 : f32 to vector<112x128xf32>
    %15 = arith.maximumf %13, %14 : vector<112x128xf32>
    %16 = arith.truncf %15 : vector<112x128xf32> to vector<112x128xbf16>
    %c0_12 = arith.constant 0 : index
    %c0_13 = arith.constant 0 : index
    %17 = vector.load %arg6[%c0_12, %c0_13] : memref<128x64xbf16, #tpu.memory_space<vmem>>, vector<128x64xbf16>
    %cst_14 = arith.constant dense<0.000000e+00> : vector<112x64xf32>
    %18 = tpu.matmul %16, %17, %cst_14 {dimension_numbers = #tpu.dot_dimension_numbers<[1], [0], [0], [1], [0, 0, 1, 1], [], []>} : vector<112x128xbf16>, vector<128x64xbf16>, vector<112x64xf32> -> vector<112x64xf32>
    %c0_15 = arith.constant 0 : index
    %c0_16 = arith.constant 0 : index
    %19 = vector.load %arg7[%c0_15, %c0_16] : memref<1x64xf32, #tpu.memory_space<vmem>>, vector<1x64xf32>
    %20 = vector.broadcast %19 : vector<1x64xf32> to vector<112x64xf32>
    %21 = arith.addf %18, %20 : vector<112x64xf32>
    %cst_17 = arith.constant 0.000000e+00 : f32
    %22 = vector.broadcast %cst_17 : f32 to vector<112x64xf32>
    %23 = arith.maximumf %21, %22 : vector<112x64xf32>
    %24 = arith.truncf %23 : vector<112x64xf32> to vector<112x64xbf16>
    %c0_18 = arith.constant 0 : index
    %c0_19 = arith.constant 0 : index
    %25 = vector.load %arg8[%c0_18, %c0_19] : memref<64x128xbf16, #tpu.memory_space<vmem>>, vector<64x128xbf16>
    %cst_20 = arith.constant dense<0.000000e+00> : vector<112x128xf32>
    %26 = tpu.matmul %24, %25, %cst_20 {dimension_numbers = #tpu.dot_dimension_numbers<[1], [0], [0], [1], [0, 0, 1, 1], [], []>} : vector<112x64xbf16>, vector<64x128xbf16>, vector<112x128xf32> -> vector<112x128xf32>
    %c0_21 = arith.constant 0 : index
    %c0_22 = arith.constant 0 : index
    %27 = vector.load %arg9[%c0_21, %c0_22] : memref<1x128xf32, #tpu.memory_space<vmem>>, vector<1x128xf32>
    %28 = vector.broadcast %27 : vector<1x128xf32> to vector<112x128xf32>
    %29 = arith.addf %26, %28 : vector<112x128xf32>
    %cst_23 = arith.constant dense<0xFF800000> : vector<112xf32>
    %30 = vector.multi_reduction <maximumf>, %29, %cst_23 [1] : vector<112x128xf32> to vector<112xf32>
    %31 = vector.shape_cast %30 : vector<112xf32> to vector<112x1xf32>
    %32 = vector.broadcast %31 : vector<112x1xf32> to vector<112x128xf32>
    %33 = arith.subf %29, %32 : vector<112x128xf32>
    %34 = math.exp %33 : vector<112x128xf32>
    %cst_24 = arith.constant dense<0.000000e+00> : vector<112xf32>
    %35 = vector.multi_reduction <add>, %34, %cst_24 [1] : vector<112x128xf32> to vector<112xf32>
    %36 = vector.shape_cast %35 : vector<112xf32> to vector<112x1xf32>
    %37 = math.log %36 : vector<112x1xf32>
    %38 = vector.broadcast %37 : vector<112x1xf32> to vector<112x128xf32>
    %39 = arith.subf %33, %38 : vector<112x128xf32>
    %c0_25 = arith.constant 0 : index
    %c0_26 = arith.constant 0 : index
    %40 = vector.load %arg10[%c0_25, %c0_26] : memref<112x128xf32, #tpu.memory_space<vmem>>, vector<112x128xf32>
    tpu.vector_store %arg10[%c0_25, %c0_26], %39 {strides = array<i32>} : memref<112x128xf32, #tpu.memory_space<vmem>>, vector<112x128xf32>,
    return
  }
  func.func @transform_0(%arg0: i32) -> (i32, i32) {
    %c0_i32 = arith.constant 0 : i32
    %c0_i32_0 = arith.constant 0 : i32
    return %arg0, %c0_i32 : i32, i32
  }
  func.func @transform_1(%arg0: i32) -> (i32, i32) {
    %c0_i32 = arith.constant 0 : i32
    %c0_i32_0 = arith.constant 0 : i32
    %c0_i32_1 = arith.constant 0 : i32
    return %c0_i32, %c0_i32_0 : i32, i32
  }
  func.func @transform_2(%arg0: i32) -> (i32, i32) {
    %c0_i32 = arith.constant 0 : i32
    %c0_i32_0 = arith.constant 0 : i32
    %c0_i32_1 = arith.constant 0 : i32
    return %c0_i32, %c0_i32_0 : i32, i32
  }
  func.func @transform_3(%arg0: i32) -> (i32, i32) {
    %c0_i32 = arith.constant 0 : i32
    %c0_i32_0 = arith.constant 0 : i32
    %c0_i32_1 = arith.constant 0 : i32
    return %c0_i32, %c0_i32_0 : i32, i32
  }
  func.func @transform_4(%arg0: i32) -> (i32, i32) {
    %c0_i32 = arith.constant 0 : i32
    %c0_i32_0 = arith.constant 0 : i32
    %c0_i32_1 = arith.constant 0 : i32
    return %c0_i32, %c0_i32_0 : i32, i32
  }
  func.func @transform_5(%arg0: i32) -> (i32, i32) {
    %c0_i32 = arith.constant 0 : i32
    %c0_i32_0 = arith.constant 0 : i32
    %c0_i32_1 = arith.constant 0 : i32
    return %c0_i32, %c0_i32_0 : i32, i32
  }
  func.func @transform_6(%arg0: i32) -> (i32, i32) {
    %c0_i32 = arith.constant 0 : i32
    %c0_i32_0 = arith.constant 0 : i32
    %c0_i32_1 = arith.constant 0 : i32
    return %c0_i32, %c0_i32_0 : i32, i32
  }
  func.func @transform_7(%arg0: i32) -> (i32, i32) {
    %c0_i32 = arith.constant 0 : i32
    %c0_i32_0 = arith.constant 0 : i32
    %c0_i32_1 = arith.constant 0 : i32
    return %c0_i32, %c0_i32_0 : i32, i32
  }
  func.func @transform_8(%arg0: i32) -> (i32, i32) {
    %c0_i32 = arith.constant 0 : i32
    %c0_i32_0 = arith.constant 0 : i32
    %c0_i32_1 = arith.constant 0 : i32
    return %c0_i32, %c0_i32_0 : i32, i32
  }
  func.func @transform_9(%arg0: i32) -> (i32, i32) {
    %c0_i32 = arith.constant 0 : i32
    %c0_i32_0 = arith.constant 0 : i32
    return %arg0, %c0_i32 : i32, i32
  }
}

</mosaic_0001>

<llo_original>
// kernel: mlp_forward.1
$region0: #{mlp_forward.1}
  #allocation0 [shape = 'u32[]', space=smem, size = 0x4, offset = 0x4, fixed_abs, tag = 'smem constant byte address 0x4 - core index']
  #allocation1 [shape = 'u32[144,128]{1,0:T(1,128)}', space=vmem, size = 0x12000, scoped, tag = 'internal scratch']
  %s0 = inlined_call_operand.vmem [shape: bf16[224,784], index: 0, kind: input, shape index: {}]
  %s1 = inlined_call_operand.vmem [shape: bf16[784,256], index: 1, kind: input, shape index: {}]
  %s2 = inlined_call_operand.vmem [shape: f32[1,256], index: 2, kind: input, shape index: {}]
  %s3 = inlined_call_operand.vmem [shape: bf16[256,128], index: 3, kind: input, shape index: {}]
  %s4 = inlined_call_operand.vmem [shape: f32[1,128], index: 4, kind: input, shape index: {}]
  %s5 = inlined_call_operand.vmem [shape: bf16[128,64], index: 5, kind: input, shape index: {}]
  %s6 = inlined_call_operand.vmem [shape: f32[1,64], index: 6, kind: input, shape index: {}]
  %s7 = inlined_call_operand.vmem [shape: bf16[64,128], index: 7, kind: input, shape index: {}]
  %s8 = inlined_call_operand.vmem [shape: f32[1,128], index: 8, kind: input, shape index: {}]
  %s9 = inlined_call_operand.vmem [shape: f32[224,128], index: 9, kind: output, shape index: {}]
  %s10 = sld [smem:[#allocation0]]
  $region69: #{mlp_forward.1} parent=0
    _
  %s12 = ssub.s32 1, %s10
  %s13 = scalar_select 0, %s12, %s10
  loop: start=0, step=1, limit=4
  $region2: #{mlp_forward.1} parent=0 // loop_pre_header
    _
  $region3: #{mlp_forward.1} parent=0 // loop_header
    %s15 = sphi 0, %s19
    %p16 = scmp.ge.s32.totalorder %s15, 4
    %s25 = sphi 0, %s27
    %s28 = sphi 0, %s25
    %s29 = sphi 0, %s28
    %s45 = sphi 0, %s29
    %s49 = sphi 0, %s49
    %s51 = sphi 0, %s49
    %s52 = sphi 0, %s51
    %s66 = sphi 0, %s52
    %s70 = sphi 0, %s70
    %s72 = sphi 0, %s70
    %s73 = sphi 0, %s72
    %s87 = sphi 0, %s73
    %s91 = sphi 0, %s91
    %s93 = sphi 0, %s91
    %s94 = sphi 0, %s93
    %s108 = sphi 0, %s94
    %s112 = sphi 0, %s112
    %s114 = sphi 0, %s112
    %s115 = sphi 0, %s114
    %s129 = sphi 0, %s115
    %s133 = sphi 0, %s133
    %s135 = sphi 0, %s133
    %s136 = sphi 0, %s135
    %s150 = sphi 0, %s136
    %s154 = sphi 0, %s154
    %s156 = sphi 0, %s154
    %s157 = sphi 0, %s156
    %s171 = sphi 0, %s157
    %s175 = sphi 0, %s175
    %s177 = sphi 0, %s175
    %s178 = sphi 0, %s177
    %s192 = sphi 0, %s178
    %s196 = sphi 0, %s196
    %s198 = sphi 0, %s196
    %s199 = sphi 0, %s198
    %s213 = sphi 0, %s199
    %s219 = sphi 0, %s221
    %s222 = sphi 0, %s219
    %s223 = sphi 0, %s222
    %s239 = sphi 0, %s223
  $region4: #{mlp_forward.1} parent=0 // loop_header_branch
    %18 = sbr.rel (%p16) target = $region8
  $region5: #{mlp_forward.1} parent=0 // loop_body
    %s20 = ssub.s32 %s15, 1
    %s21 = ssub.s32 %s15, 2
    %s22 = sadd.s32 %s15, 1
    %s23 = ssub.s32 %s15, %s22
    %p24 = scmp.eq.s32.totalorder %s23, 0
    %s26 = sadd.s32 %s25, 1
    %s27 = scalar_select %p24, %s25, %s26
    %p30 = pneg %p24
    %p31 = scmp.eq.s32.totalorder %s15, 1
    %p32 = por %p30, %p31
    %p33 = scmp.ne.s32.totalorder %s25, %s28
    %p34 = scmp.eq.s32.totalorder %s15, 0
    %p35 = por %p33, %p34
    %p36 = scmp.ne.s32.totalorder %s25, %s28
    %p37 = scmp.eq.s32.totalorder %s20, 1
    %p38 = por %p36, %p37
    %p39 = scmp.ne.s32.totalorder %s28, %s29
    %p40 = scmp.eq.s32.totalorder %s20, 0
    %p41 = por %p39, %p40
    %p42 = scmp.ne.s32.totalorder %s28, %s29
    %p43 = scmp.eq.s32.totalorder %s21, 1
    %p44 = por %p42, %p43
    %p46 = scmp.ne.s32.totalorder %s29, %s45
    %p47 = scmp.eq.s32.totalorder %s21, 0
    %p48 = por %p46, %p47
    %s50 = sadd.s32 %s49, 1
    %p53 = scmp.eq.s32.totalorder %s15, 1
    %p54 = scmp.ne.s32.totalorder %s49, %s51
    %p55 = scmp.eq.s32.totalorder %s15, 0
    %p56 = por %p54, %p55
    %p57 = scmp.ne.s32.totalorder %s49, %s51
    %p58 = scmp.eq.s32.totalorder %s20, 1
    %p59 = por %p57, %p58
    %p60 = scmp.ne.s32.totalorder %s51, %s52
    %p61 = scmp.eq.s32.totalorder %s20, 0
    %p62 = por %p60, %p61
    %p63 = scmp.ne.s32.totalorder %s51, %s52
    %p64 = scmp.eq.s32.totalorder %s21, 1
    %p65 = por %p63, %p64
    %p67 = scmp.ne.s32.totalorder %s52, %s66
    %p68 = scmp.eq.s32.totalorder %s21, 0
    %p69 = por %p67, %p68
    %s71 = sadd.s32 %s70, 1
    %p74 = scmp.eq.s32.totalorder %s15, 1
    %p75 = scmp.ne.s32.totalorder %s70, %s72
    %p76 = scmp.eq.s32.totalorder %s15, 0
    %p77 = por %p75, %p76
    %p78 = scmp.ne.s32.totalorder %s70, %s72
    %p79 = scmp.eq.s32.totalorder %s20, 1
    %p80 = por %p78, %p79
    %p81 = scmp.ne.s32.totalorder %s72, %s73
    %p82 = scmp.eq.s32.totalorder %s20, 0
    %p83 = por %p81, %p82
    %p84 = scmp.ne.s32.totalorder %s72, %s73
    %p85 = scmp.eq.s32.totalorder %s21, 1
    %p86 = por %p84, %p85
    %p88 = scmp.ne.s32.totalorder %s73, %s87
    %p89 = scmp.eq.s32.totalorder %s21, 0
    %p90 = por %p88, %p89
    %s92 = sadd.s32 %s91, 1
    %p95 = scmp.eq.s32.totalorder %s15, 1
    %p96 = scmp.ne.s32.totalorder %s91, %s93
    %p97 = scmp.eq.s32.totalorder %s15, 0
    %p98 = por %p96, %p97
    %p99 = scmp.ne.s32.totalorder %s91, %s93
    %p100 = scmp.eq.s32.totalorder %s20, 1
    %p101 = por %p99, %p100
    %p102 = scmp.ne.s32.totalorder %s93, %s94
    %p103 = scmp.eq.s32.totalorder %s20, 0
    %p104 = por %p102, %p103
    %p105 = scmp.ne.s32.totalorder %s93, %s94
    %p106 = scmp.eq.s32.totalorder %s21, 1
    %p107 = por %p105, %p106
    %p109 = scmp.ne.s32.totalorder %s94, %s108
    %p110 = scmp.eq.s32.totalorder %s21, 0
    %p111 = por %p109, %p110
    %s113 = sadd.s32 %s112, 1
    %p116 = scmp.eq.s32.totalorder %s15, 1
    %p117 = scmp.ne.s32.totalorder %s112, %s114
    %p118 = scmp.eq.s32.totalorder %s15, 0
    %p119 = por %p117, %p118
    %p120 = scmp.ne.s32.totalorder %s112, %s114
    %p121 = scmp.eq.s32.totalorder %s20, 1
    %p122 = por %p120, %p121
    %p123 = scmp.ne.s32.totalorder %s114, %s115
    %p124 = scmp.eq.s32.totalorder %s20, 0
    %p125 = por %p123, %p124
    %p126 = scmp.ne.s32.totalorder %s114, %s115
    %p127 = scmp.eq.s32.totalorder %s21, 1
    %p128 = por %p126, %p127
    %p130 = scmp.ne.s32.totalorder %s115, %s129
    %p131 = scmp.eq.s32.totalorder %s21, 0
    %p132 = por %p130, %p131
    %s134 = sadd.s32 %s133, 1
    %p137 = scmp.eq.s32.totalorder %s15, 1
    %p138 = scmp.ne.s32.totalorder %s133, %s135
    %p139 = scmp.eq.s32.totalorder %s15, 0
    %p140 = por %p138, %p139
    %p141 = scmp.ne.s32.totalorder %s133, %s135
    %p142 = scmp.eq.s32.totalorder %s20, 1
    %p143 = por %p141, %p142
    %p144 = scmp.ne.s32.totalorder %s135, %s136
    %p145 = scmp.eq.s32.totalorder %s20, 0
    %p146 = por %p144, %p145
    %p147 = scmp.ne.s32.totalorder %s135, %s136
    %p148 = scmp.eq.s32.totalorder %s21, 1
    %p149 = por %p147, %p148
    %p151 = scmp.ne.s32.totalorder %s136, %s150
    %p152 = scmp.eq.s32.totalorder %s21, 0
    %p153 = por %p151, %p152
    %s155 = sadd.s32 %s154, 1
    %p158 = scmp.eq.s32.totalorder %s15, 1
    %p159 = scmp.ne.s32.totalorder %s154, %s156
    %p160 = scmp.eq.s32.totalorder %s15, 0
    %p161 = por %p159, %p160
    %p162 = scmp.ne.s32.totalorder %s154, %s156
    %p163 = scmp.eq.s32.totalorder %s20, 1
    %p164 = por %p162, %p163
    %p165 = scmp.ne.s32.totalorder %s156, %s157
    %p166 = scmp.eq.s32.totalorder %s20, 0
    %p167 = por %p165, %p166
    %p168 = scmp.ne.s32.totalorder %s156, %s157
    %p169 = scmp.eq.s32.totalorder %s21, 1
    %p170 = por %p168, %p169
    %p172 = scmp.ne.s32.totalorder %s157, %s171
    %p173 = scmp.eq.s32.totalorder %s21, 0
    %p174 = por %p172, %p173
    %s176 = sadd.s32 %s175, 1
    %p179 = scmp.eq.s32.totalorder %s15, 1
    %p180 = scmp.ne.s32.totalorder %s175, %s177
    %p181 = scmp.eq.s32.totalorder %s15, 0
    %p182 = por %p180, %p181
    %p183 = scmp.ne.s32.totalorder %s175, %s177
    %p184 = scmp.eq.s32.totalorder %s20, 1
    %p185 = por %p183, %p184
    %p186 = scmp.ne.s32.totalorder %s177, %s178
    %p187 = scmp.eq.s32.totalorder %s20, 0
    %p188 = por %p186, %p187
    %p189 = scmp.ne.s32.totalorder %s177, %s178
    %p190 = scmp.eq.s32.totalorder %s21, 1
    %p191 = por %p189, %p190
    %p193 = scmp.ne.s32.totalorder %s178, %s192
    %p194 = scmp.eq.s32.totalorder %s21, 0
    %p195 = por %p193, %p194
    %s197 = sadd.s32 %s196, 1
    %p200 = scmp.eq.s32.totalorder %s15, 1
    %p201 = scmp.ne.s32.totalorder %s196, %s198
    %p202 = scmp.eq.s32.totalorder %s15, 0
    %p203 = por %p201, %p202
    %p204 = scmp.ne.s32.totalorder %s196, %s198
    %p205 = scmp.eq.s32.totalorder %s20, 1
    %p206 = por %p204, %p205
    %p207 = scmp.ne.s32.totalorder %s198, %s199
    %p208 = scmp.eq.s32.totalorder %s20, 0
    %p209 = por %p207, %p208
    %p210 = scmp.ne.s32.totalorder %s198, %s199
    %p211 = scmp.eq.s32.totalorder %s21, 1
    %p212 = por %p210, %p211
    %p214 = scmp.ne.s32.totalorder %s199, %s213
    %p215 = scmp.eq.s32.totalorder %s21, 0
    %p216 = por %p214, %p215
    %s217 = ssub.s32 %s15, %s22
    %p218 = scmp.eq.s32.totalorder %s217, 0
    %s220 = sadd.s32 %s219, 1
    %s221 = scalar_select %p218, %s219, %s220
    %p224 = pneg %p218
    %p225 = scmp.eq.s32.totalorder %s15, 1
    %p226 = por %p224, %p225
    %p227 = scmp.ne.s32.totalorder %s219, %s222
    %p228 = scmp.eq.s32.totalorder %s15, 0
    %p229 = por %p227, %p228
    %p230 = scmp.ne.s32.totalorder %s219, %s222
    %p231 = scmp.eq.s32.totalorder %s20, 1
    %p232 = por %p230, %p231
    %p233 = scmp.ne.s32.totalorder %s222, %s223
    %p234 = scmp.eq.s32.totalorder %s20, 0
    %p235 = por %p233, %p234
    %p236 = scmp.ne.s32.totalorder %s222, %s223
    %p237 = scmp.eq.s32.totalorder %s21, 1
    %p238 = por %p236, %p237
    %p240 = scmp.ne.s32.totalorder %s223, %s239
    %p241 = scmp.eq.s32.totalorder %s21, 0
    %p242 = por %p240, %p241
    %p243 = scmp.le.s32.totalorder 1, %s15
    %p244 = scmp.lt.s32.totalorder %s15, 3
    %p245 = pnand %p243, %p244
    %p246 = pneg %p245
    // Predicated region
    $region9: #{mlp_forward.1} parent=5 // pred_check
      _
    $region10: #{mlp_forward.1} parent=5 // pred_check_branch
      %248 = sbr.rel (%p245) target = $region12
    $region11: #{mlp_forward.1} parent=5 // pred_region
      %s249 = ssub.s32 %s15, 1
      // Predicated region
      $region13: #{mlp_forward.1} parent=11 // pred_check
        %p250 = pneg %p62
      $region14: #{mlp_forward.1} parent=11 // pred_check_branch
        %252 = sbr.rel (%p250) target = $region16
      $region15: #{mlp_forward.1} parent=11 // pred_region
        _
      $region16: #{mlp_forward.1} parent=11 // pred_fallthru
        _
      // Predicated region
      $region17: #{mlp_forward.1} parent=11 // pred_check
        %p253 = pneg %p83
      $region18: #{mlp_forward.1} parent=11 // pred_check_branch
        %255 = sbr.rel (%p253) target = $region20
      $region19: #{mlp_forward.1} parent=11 // pred_region
        _
      $region20: #{mlp_forward.1} parent=11 // pred_fallthru
        _
      // Predicated region
      $region21: #{mlp_forward.1} parent=11 // pred_check
        %p256 = pneg %p104
      $region22: #{mlp_forward.1} parent=11 // pred_check_branch
        %258 = sbr.rel (%p256) target = $region24
      $region23: #{mlp_forward.1} parent=11 // pred_region
        _
      $region24: #{mlp_forward.1} parent=11 // pred_fallthru
        _
      // Predicated region
      $region25: #{mlp_forward.1} parent=11 // pred_check
        %p259 = pneg %p125
      $region26: #{mlp_forward.1} parent=11 // pred_check_branch
        %261 = sbr.rel (%p259) target = $region28
      $region27: #{mlp_forward.1} parent=11 // pred_region
        _
      $region28: #{mlp_forward.1} parent=11 // pred_fallthru
        _
      // Predicated region
      $region29: #{mlp_forward.1} parent=11 // pred_check
        %p262 = pneg %p146
      $region30: #{mlp_forward.1} parent=11 // pred_check_branch
        %264 = sbr.rel (%p262) target = $region32
      $region31: #{mlp_forward.1} parent=11 // pred_region
        _
      $region32: #{mlp_forward.1} parent=11 // pred_fallthru
        _
      // Predicated region
      $region33: #{mlp_forward.1} parent=11 // pred_check
        %p265 = pneg %p167
      $region34: #{mlp_forward.1} parent=11 // pred_check_branch
        %267 = sbr.rel (%p265) target = $region36
      $region35: #{mlp_forward.1} parent=11 // pred_region
        _
      $region36: #{mlp_forward.1} parent=11 // pred_fallthru
        _
      // Predicated region
      $region37: #{mlp_forward.1} parent=11 // pred_check
        %p268 = pneg %p188
      $region38: #{mlp_forward.1} parent=11 // pred_check_branch
        %270 = sbr.rel (%p268) target = $region40
      $region39: #{mlp_forward.1} parent=11 // pred_region
        _
      $region40: #{mlp_forward.1} parent=11 // pred_fallthru
        _
      // Predicated region
      $region41: #{mlp_forward.1} parent=11 // pred_check
        %p271 = pneg %p209
      $region42: #{mlp_forward.1} parent=11 // pred_check_branch
        %273 = sbr.rel (%p271) target = $region44
      $region43: #{mlp_forward.1} parent=11 // pred_region
        _
      $region44: #{mlp_forward.1} parent=11 // pred_fallthru
        _
    $region12: #{mlp_forward.1} parent=5 // pred_fallthru
      _
    %p274 = scmp.lt.s32.totalorder %s15, 2
    // Predicated region
    $region45: #{mlp_forward.1} parent=5 // pred_check
      %p275 = pneg %p274
    $region46: #{mlp_forward.1} parent=5 // pred_check_branch
      %277 = sbr.rel (%p275) target = $region48
    $region47: #{mlp_forward.1} parent=5 // pred_region
      // Predicated region
      $region49: #{mlp_forward.1} parent=47 // pred_check
        %p278 = pneg %p35
      $region50: #{mlp_forward.1} parent=47 // pred_check_branch
        %280 = sbr.rel (%p278) target = $region52
      $region51: #{mlp_forward.1} parent=47 // pred_region
        %s281 = smul.u32 14, %s15
        %p282 = scmp.lt.s32.totalorder %s281, 27
        %s283 = scalar_select %p282, %s281, 27
        %s284 = smul.addr %s283, 7
        %s285 = smul.addr %s284, 4
        %s286 = scalar_lea.vmem %s0, %s285
        %s287 = smul.u32 14, %s15
      $region52: #{mlp_forward.1} parent=47 // pred_fallthru
        _
    $region48: #{mlp_forward.1} parent=5 // pred_fallthru
      _
    %p288 = scmp.le.s32.totalorder 1, %s15
    %p289 = scmp.lt.s32.totalorder %s15, 3
    %p290 = pnand %p288, %p289
    %p291 = pneg %p290
    // Predicated region
    $region53: #{mlp_forward.1} parent=5 // pred_check
      _
    $region54: #{mlp_forward.1} parent=5 // pred_check_branch
      %293 = sbr.rel (%p290) target = $region56
    $region55: #{mlp_forward.1} parent=5 // pred_region
      %s294 = ssub.s32 %s15, 1
      %s295 = smul.u32 14, %s20
      %p296 = scmp.lt.s32.totalorder %s295, 27
      %s297 = scalar_select %p296, %s295, 27
      %s298 = smul.addr %s297, 7
      %s299 = smul.addr %s298, 4
      %s300 = scalar_lea.vmem %s0, %s299
      %p301 = pneg %p41
      %p302 = pneg %p38
      %p303 = pneg %p62
      %p304 = pneg %p59
      %p305 = pneg %p83
      %p306 = pneg %p80
      %p307 = pneg %p104
      %p308 = pneg %p101
      %p309 = pneg %p125
      %p310 = pneg %p122
      %p311 = pneg %p146
      %p312 = pneg %p143
      %p313 = pneg %p167
      %p314 = pneg %p164
      %p315 = pneg %p188
      %p316 = pneg %p185
      %p317 = pneg %p209
      %p318 = pneg %p206
      %p319 = pneg %p235
      %p320 = pneg %p232
      %s321 = smul.u32 14, %s20
      %p322 = scmp.lt.s32.totalorder %s321, 27
      %s323 = scalar_select %p322, %s321, 27
      %s324 = smul.addr %s323, 8
      %s325 = scalar_lea.vmem %s9, %s324
      %s326 = smul.u32 14, %s20
      %p327 = scmp.lt.s32.totalorder %s326, 27
      %s328 = scalar_select %p327, %s326, 27
      %s329 = smul.addr %s328, 7
      %s330 = smul.addr %s329, 4
      %s331 = scalar_lea.vmem %s0, %s330
      %s332 = smul.u32 14, %s20
      %s333 = smul.u32 14, %s20
      %p334 = scmp.lt.s32.totalorder %s333, 27
      %s335 = scalar_select %p334, %s333, 27
      %s336 = smul.addr %s335, 8
      %s337 = scalar_lea.vmem %s9, %s336
      %s338 = smul.u32 14, %s20
      %v340 = vld [vmem:[%s331] sm:$0xff]
      %v341 = vld [vmem:[%s331 + $0x8] sm:$0xff]
      %v342 = vld [vmem:[%s331 + $0x10] sm:$0xff]
      %v343 = vld [vmem:[%s331 + $0x18] sm:$0xf]
      %v344 = vld [vmem:[%s331 + $0x1c] sm:$0xff]
      %v345 = vld [vmem:[%s331 + $0x24] sm:$0xff]
      %v346 = vld [vmem:[%s331 + $0x2c] sm:$0xff]
      %v347 = vld [vmem:[%s331 + $0x34] sm:$0xf]
      %v348 = vld [vmem:[%s331 + $0x38] sm:$0xff]
      %v349 = vld [vmem:[%s331 + $0x40] sm:$0xff]
      %v350 = vld [vmem:[%s331 + $0x48] sm:$0xff]
      %v351 = vld [vmem:[%s331 + $0x50] sm:$0xf]
      %v352 = vld [vmem:[%s331 + $0x54] sm:$0xff]
      %v353 = vld [vmem:[%s331 + $0x5c] sm:$0xff]
      %v354 = vld [vmem:[%s331 + $0x64] sm:$0xff]
      %v355 = vld [vmem:[%s331 + $0x6c] sm:$0xf]
      %v356 = vld [vmem:[%s331 + $0x70] sm:$0xff]
      %v357 = vld [vmem:[%s331 + $0x78] sm:$0xff]
      %v358 = vld [vmem:[%s331 + $0x80] sm:$0xff]
      %v359 = vld [vmem:[%s331 + $0x88] sm:$0xf]
      %v360 = vld [vmem:[%s331 + $0x8c] sm:$0xff]
      %v361 = vld [vmem:[%s331 + $0x94] sm:$0xff]
      %v362 = vld [vmem:[%s331 + $0x9c] sm:$0xff]
      %v363 = vld [vmem:[%s331 + $0xa4] sm:$0xf]
      %v364 = vld [vmem:[%s331 + $0xa8] sm:$0xff]
      %v365 = vld [vmem:[%s331 + $0xb0] sm:$0xff]
      %v366 = vld [vmem:[%s331 + $0xb8] sm:$0xff]
      %v367 = vld [vmem:[%s331 + $0xc0] sm:$0xf]
      %v368 = vld [vmem:[%s331 + $0xc4] sm:$0xff]
      %v369 = vld [vmem:[%s331 + $0xcc] sm:$0xff]
      %v370 = vld [vmem:[%s331 + $0xd4] sm:$0xff]
      %v371 = vld [vmem:[%s331 + $0xdc] sm:$0xf]
      %v372 = vld [vmem:[%s331 + $0xe0] sm:$0xff]
      %v373 = vld [vmem:[%s331 + $0xe8] sm:$0xff]
      %v374 = vld [vmem:[%s331 + $0xf0] sm:$0xff]
      %v375 = vld [vmem:[%s331 + $0xf8] sm:$0xf]
      %v376 = vld [vmem:[%s331 + $0xfc] sm:$0xff]
      %v377 = vld [vmem:[%s331 + $0x104] sm:$0xff]
      %v378 = vld [vmem:[%s331 + $0x10c] sm:$0xff]
      %v379 = vld [vmem:[%s331 + $0x114] sm:$0xf]
      %v380 = vld [vmem:[%s331 + $0x118] sm:$0xff]
      %v381 = vld [vmem:[%s331 + $0x120] sm:$0xff]
      %v382 = vld [vmem:[%s331 + $0x128] sm:$0xff]
      %v383 = vld [vmem:[%s331 + $0x130] sm:$0xf]
      %v384 = vld [vmem:[%s331 + $0x134] sm:$0xff]
      %v385 = vld [vmem:[%s331 + $0x13c] sm:$0xff]
      %v386 = vld [vmem:[%s331 + $0x144] sm:$0xff]
      %v387 = vld [vmem:[%s331 + $0x14c] sm:$0xf]
      %v388 = vld [vmem:[%s331 + $0x150] sm:$0xff]
      %v389 = vld [vmem:[%s331 + $0x158] sm:$0xff]
      %v390 = vld [vmem:[%s331 + $0x160] sm:$0xff]
      %v391 = vld [vmem:[%s331 + $0x168] sm:$0xf]
      %v392 = vld [vmem:[%s331 + $0x16c] sm:$0xff]
      %v393 = vld [vmem:[%s331 + $0x174] sm:$0xff]
      %v394 = vld [vmem:[%s331 + $0x17c] sm:$0xff]
      %v395 = vld [vmem:[%s331 + $0x184] sm:$0xf]
      %v396 = vld [vmem:[%s1] sm:$0xff]
      %v397 = vld [vmem:[%s1 + $0x8] sm:$0xff]
      %v398 = vld [vmem:[%s1 + $0x10] sm:$0xff]
      %v399 = vld [vmem:[%s1 + $0x18] sm:$0xff]
      %v400 = vld [vmem:[%s1 + $0x20] sm:$0xff]
      %v401 = vld [vmem:[%s1 + $0x28] sm:$0xff]
      %v402 = vld [vmem:[%s1 + $0x30] sm:$0xff]
      %v403 = vld [vmem:[%s1 + $0x38] sm:$0xff]
      %v404 = vld [vmem:[%s1 + $0x40] sm:$0xff]
      %v405 = vld [vmem:[%s1 + $0x48] sm:$0xff]
      %v406 = vld [vmem:[%s1 + $0x50] sm:$0xff]
      %v407 = vld [vmem:[%s1 + $0x58] sm:$0xff]
      %v408 = vld [vmem:[%s1 + $0x60] sm:$0xff]
      %v409 = vld [vmem:[%s1 + $0x68] sm:$0xff]
      %v410 = vld [vmem:[%s1 + $0x70] sm:$0xff]
      %v411 = vld [vmem:[%s1 + $0x78] sm:$0xff]
      %v412 = vld [vmem:[%s1 + $0x80] sm:$0xff]
      %v413 = vld [vmem:[%s1 + $0x88] sm:$0xff]
      %v414 = vld [vmem:[%s1 + $0x90] sm:$0xff]
      %v415 = vld [vmem:[%s1 + $0x98] sm:$0xff]
      %v416 = vld [vmem:[%s1 + $0xa0] sm:$0xff]
      %v417 = vld [vmem:[%s1 + $0xa8] sm:$0xff]
      %v418 = vld [vmem:[%s1 + $0xb0] sm:$0xff]
      %v419 = vld [vmem:[%s1 + $0xb8] sm:$0xff]
      %v420 = vld [vmem:[%s1 + $0xc0] sm:$0xff]
      %v421 = vld [vmem:[%s1 + $0xc8] sm:$0xff]
      %v422 = vld [vmem:[%s1 + $0xd0] sm:$0xff]
      %v423 = vld [vmem:[%s1 + $0xd8] sm:$0xff]
      %v424 = vld [vmem:[%s1 + $0xe0] sm:$0xff]
      %v425 = vld [vmem:[%s1 + $0xe8] sm:$0xff]
      %v426 = vld [vmem:[%s1 + $0xf0] sm:$0xff]
      %v427 = vld [vmem:[%s1 + $0xf8] sm:$0xff]
      %v428 = vld [vmem:[%s1 + $0x100] sm:$0xff]
      %v429 = vld [vmem:[%s1 + $0x108] sm:$0xff]
      %v430 = vld [vmem:[%s1 + $0x110] sm:$0xff]
      %v431 = vld [vmem:[%s1 + $0x118] sm:$0xff]
      %v432 = vld [vmem:[%s1 + $0x120] sm:$0xff]
      %v433 = vld [vmem:[%s1 + $0x128] sm:$0xff]
      %v434 = vld [vmem:[%s1 + $0x130] sm:$0xff]
      %v435 = vld [vmem:[%s1 + $0x138] sm:$0xff]
      %v436 = vld [vmem:[%s1 + $0x140] sm:$0xff]
      %v437 = vld [vmem:[%s1 + $0x148] sm:$0xff]
      %v438 = vld [vmem:[%s1 + $0x150] sm:$0xff]
      %v439 = vld [vmem:[%s1 + $0x158] sm:$0xff]
      %v440 = vld [vmem:[%s1 + $0x160] sm:$0xff]
      %v441 = vld [vmem:[%s1 + $0x168] sm:$0xff]
      %v442 = vld [vmem:[%s1 + $0x170] sm:$0xff]
      %v443 = vld [vmem:[%s1 + $0x178] sm:$0xff]
      %v444 = vld [vmem:[%s1 + $0x180] sm:$0xff]
      %v445 = vld [vmem:[%s1 + $0x188] sm:$0xff]
      %v446 = vld [vmem:[%s1 + $0x190] sm:$0xff]
      %v447 = vld [vmem:[%s1 + $0x198] sm:$0xff]
      %v448 = vld [vmem:[%s1 + $0x1a0] sm:$0xff]
      %v449 = vld [vmem:[%s1 + $0x1a8] sm:$0xff]
      %v450 = vld [vmem:[%s1 + $0x1b0] sm:$0xff]
      %v451 = vld [vmem:[%s1 + $0x1b8] sm:$0xff]
      %v452 = vld [vmem:[%s1 + $0x1c0] sm:$0xff]
      %v453 = vld [vmem:[%s1 + $0x1c8] sm:$0xff]
      %v454 = vld [vmem:[%s1 + $0x1d0] sm:$0xff]
      %v455 = vld [vmem:[%s1 + $0x1d8] sm:$0xff]
      %v456 = vld [vmem:[%s1 + $0x1e0] sm:$0xff]
      %v457 = vld [vmem:[%s1 + $0x1e8] sm:$0xff]
      %v458 = vld [vmem:[%s1 + $0x1f0] sm:$0xff]
      %v459 = vld [vmem:[%s1 + $0x1f8] sm:$0xff]
      %v460 = vld [vmem:[%s1 + $0x200] sm:$0xff]
      %v461 = vld [vmem:[%s1 + $0x208] sm:$0xff]
      %v462 = vld [vmem:[%s1 + $0x210] sm:$0xff]
      %v463 = vld [vmem:[%s1 + $0x218] sm:$0xff]
      %v464 = vld [vmem:[%s1 + $0x220] sm:$0xff]
      %v465 = vld [vmem:[%s1 + $0x228] sm:$0xff]
      %v466 = vld [vmem:[%s1 + $0x230] sm:$0xff]
      %v467 = vld [vmem:[%s1 + $0x238] sm:$0xff]
      %v468 = vld [vmem:[%s1 + $0x240] sm:$0xff]
      %v469 = vld [vmem:[%s1 + $0x248] sm:$0xff]
      %v470 = vld [vmem:[%s1 + $0x250] sm:$0xff]
      %v471 = vld [vmem:[%s1 + $0x258] sm:$0xff]
      %v472 = vld [vmem:[%s1 + $0x260] sm:$0xff]
      %v473 = vld [vmem:[%s1 + $0x268] sm:$0xff]
      %v474 = vld [vmem:[%s1 + $0x270] sm:$0xff]
      %v475 = vld [vmem:[%s1 + $0x278] sm:$0xff]
      %v476 = vld [vmem:[%s1 + $0x280] sm:$0xff]
      %v477 = vld [vmem:[%s1 + $0x288] sm:$0xff]
      %v478 = vld [vmem:[%s1 + $0x290] sm:$0xff]
      %v479 = vld [vmem:[%s1 + $0x298] sm:$0xff]
      %v480 = vld [vmem:[%s1 + $0x2a0] sm:$0xff]
      %v481 = vld [vmem:[%s1 + $0x2a8] sm:$0xff]
      %v482 = vld [vmem:[%s1 + $0x2b0] sm:$0xff]
      %v483 = vld [vmem:[%s1 + $0x2b8] sm:$0xff]
      %v484 = vld [vmem:[%s1 + $0x2c0] sm:$0xff]
      %v485 = vld [vmem:[%s1 + $0x2c8] sm:$0xff]
      %v486 = vld [vmem:[%s1 + $0x2d0] sm:$0xff]
      %v487 = vld [vmem:[%s1 + $0x2d8] sm:$0xff]
      %v488 = vld [vmem:[%s1 + $0x2e0] sm:$0xff]
      %v489 = vld [vmem:[%s1 + $0x2e8] sm:$0xff]
      %v490 = vld [vmem:[%s1 + $0x2f0] sm:$0xff]
      %v491 = vld [vmem:[%s1 + $0x2f8] sm:$0xff]
      %v492 = vld [vmem:[%s1 + $0x300] sm:$0xff]
      %v493 = vld [vmem:[%s1 + $0x308] sm:$0xff]
      %v494 = vld [vmem:[%s2] sm:$0x3]
      %v496 = vlaneseq
      %v497 = vshrl.u32 %v496, 7
      %v498 = vsub.s32 0, %v497
      %v499 = vrot.slane %v494, %v498
      %v500 = vlaneseq
      %v501 = vshrl.u32 %v500, 7
      %v502 = vsub.s32 1, %v501
      %v503 = vrot.slane %v494, %v502
      %v562 = vunpack.c.l.b16 %v340
      %v563 = vunpack.c.h.b16 %v340
      %v564 = vunpack.c.l.b16 %v341
      %v565 = vunpack.c.h.b16 %v341
      %v566 = vunpack.c.l.b16 %v342
      %v567 = vunpack.c.h.b16 %v342
      %v568 = vunpack.c.l.b16 %v343
      %v569 = vunpack.c.l.b16 %v344
      %v570 = vunpack.c.h.b16 %v344
      %v571 = vunpack.c.l.b16 %v345
      %v572 = vunpack.c.h.b16 %v345
      %v573 = vunpack.c.l.b16 %v346
      %v574 = vunpack.c.h.b16 %v346
      %v575 = vunpack.c.l.b16 %v347
      %v576 = vunpack.c.l.b16 %v348
      %v577 = vunpack.c.h.b16 %v348
      %v578 = vunpack.c.l.b16 %v349
      %v579 = vunpack.c.h.b16 %v349
      %v580 = vunpack.c.l.b16 %v350
      %v581 = vunpack.c.h.b16 %v350
      %v582 = vunpack.c.l.b16 %v351
      %v583 = vunpack.c.l.b16 %v352
      %v584 = vunpack.c.h.b16 %v352
      %v585 = vunpack.c.l.b16 %v353
      %v586 = vunpack.c.h.b16 %v353
      %v587 = vunpack.c.l.b16 %v354
      %v588 = vunpack.c.h.b16 %v354
      %v589 = vunpack.c.l.b16 %v355
      %v590 = vunpack.c.l.b16 %v356
      %v591 = vunpack.c.h.b16 %v356
      %v592 = vunpack.c.l.b16 %v357
      %v593 = vunpack.c.h.b16 %v357
      %v594 = vunpack.c.l.b16 %v358
      %v595 = vunpack.c.h.b16 %v358
      %v596 = vunpack.c.l.b16 %v359
      %v597 = vunpack.c.l.b16 %v360
      %v598 = vunpack.c.h.b16 %v360
      %v599 = vunpack.c.l.b16 %v361
      %v600 = vunpack.c.h.b16 %v361
      %v601 = vunpack.c.l.b16 %v362
      %v602 = vunpack.c.h.b16 %v362
      %v603 = vunpack.c.l.b16 %v363
      %v604 = vunpack.c.l.b16 %v364
      %v605 = vunpack.c.h.b16 %v364
      %v606 = vunpack.c.l.b16 %v365
      %v607 = vunpack.c.h.b16 %v365
      %v608 = vunpack.c.l.b16 %v366
      %v609 = vunpack.c.h.b16 %v366
      %v610 = vunpack.c.l.b16 %v367
      %v611 = vunpack.c.l.b16 %v368
      %v612 = vunpack.c.h.b16 %v368
      %v613 = vunpack.c.l.b16 %v369
      %v614 = vunpack.c.h.b16 %v369
      %v615 = vunpack.c.l.b16 %v370
      %v616 = vunpack.c.h.b16 %v370
      %v617 = vunpack.c.l.b16 %v371
      %v618 = vunpack.c.l.b16 %v372
      %v619 = vunpack.c.h.b16 %v372
      %v620 = vunpack.c.l.b16 %v373
      %v621 = vunpack.c.h.b16 %v373
      %v622 = vunpack.c.l.b16 %v374
      %v623 = vunpack.c.h.b16 %v374
      %v624 = vunpack.c.l.b16 %v375
      %v625 = vunpack.c.l.b16 %v376
      %v626 = vunpack.c.h.b16 %v376
      %v627 = vunpack.c.l.b16 %v377
      %v628 = vunpack.c.h.b16 %v377
      %v629 = vunpack.c.l.b16 %v378
      %v630 = vunpack.c.h.b16 %v378
      %v631 = vunpack.c.l.b16 %v379
      %v632 = vunpack.c.l.b16 %v380
      %v633 = vunpack.c.h.b16 %v380
      %v634 = vunpack.c.l.b16 %v381
      %v635 = vunpack.c.h.b16 %v381
      %v636 = vunpack.c.l.b16 %v382
      %v637 = vunpack.c.h.b16 %v382
      %v638 = vunpack.c.l.b16 %v383
      %v639 = vunpack.c.l.b16 %v384
      %v640 = vunpack.c.h.b16 %v384
      %v641 = vunpack.c.l.b16 %v385
      %v642 = vunpack.c.h.b16 %v385
      %v643 = vunpack.c.l.b16 %v386
      %v644 = vunpack.c.h.b16 %v386
      %v645 = vunpack.c.l.b16 %v387
      %v646 = vunpack.c.l.b16 %v388
      %v647 = vunpack.c.h.b16 %v388
      %v648 = vunpack.c.l.b16 %v389
      %v649 = vunpack.c.h.b16 %v389
      %v650 = vunpack.c.l.b16 %v390
      %v651 = vunpack.c.h.b16 %v390
      %v652 = vunpack.c.l.b16 %v391
      %v653 = vunpack.c.l.b16 %v392
      %v654 = vunpack.c.h.b16 %v392
      %v655 = vunpack.c.l.b16 %v393
      %v656 = vunpack.c.h.b16 %v393
      %v657 = vunpack.c.l.b16 %v394
      %v658 = vunpack.c.h.b16 %v394
      %v659 = vunpack.c.l.b16 %v395
      %v660 = vpack.c.b16 %v569, %v562
      %v661 = vpack.c.b16 %v570, %v563
      %v662 = vpack.c.b16 %v571, %v564
      %v663 = vpack.c.b16 %v572, %v565
      %v664 = vpack.c.b16 %v573, %v566
      %v665 = vpack.c.b16 %v574, %v567
      %v666 = vpack.c.b16 %v575, %v568
      %v667 = vpack.c.b16 %v583, %v576
      %v668 = vpack.c.b16 %v584, %v577
      %v669 = vpack.c.b16 %v585, %v578
      %v670 = vpack.c.b16 %v586, %v579
      %v671 = vpack.c.b16 %v587, %v580
      %v672 = vpack.c.b16 %v588, %v581
      %v673 = vpack.c.b16 %v589, %v582
      %v674 = vpack.c.b16 %v597, %v590
      %v675 = vpack.c.b16 %v598, %v591
      %v676 = vpack.c.b16 %v599, %v592
      %v677 = vpack.c.b16 %v600, %v593
      %v678 = vpack.c.b16 %v601, %v594
      %v679 = vpack.c.b16 %v602, %v595
      %v680 = vpack.c.b16 %v603, %v596
      %v681 = vpack.c.b16 %v611, %v604
      %v682 = vpack.c.b16 %v612, %v605
      %v683 = vpack.c.b16 %v613, %v606
      %v684 = vpack.c.b16 %v614, %v607
      %v685 = vpack.c.b16 %v615, %v608
      %v686 = vpack.c.b16 %v616, %v609
      %v687 = vpack.c.b16 %v617, %v610
      %v688 = vpack.c.b16 %v625, %v618
      %v689 = vpack.c.b16 %v626, %v619
      %v690 = vpack.c.b16 %v627, %v620
      %v691 = vpack.c.b16 %v628, %v621
      %v692 = vpack.c.b16 %v629, %v622
      %v693 = vpack.c.b16 %v630, %v623
      %v694 = vpack.c.b16 %v631, %v624
      %v695 = vpack.c.b16 %v639, %v632
      %v696 = vpack.c.b16 %v640, %v633
      %v697 = vpack.c.b16 %v641, %v634
      %v698 = vpack.c.b16 %v642, %v635
      %v699 = vpack.c.b16 %v643, %v636
      %v700 = vpack.c.b16 %v644, %v637
      %v701 = vpack.c.b16 %v645, %v638
      %v702 = vpack.c.b16 %v653, %v646
      %v703 = vpack.c.b16 %v654, %v647
      %v704 = vpack.c.b16 %v655, %v648
      %v705 = vpack.c.b16 %v656, %v649
      %v706 = vpack.c.b16 %v657, %v650
      %v707 = vpack.c.b16 %v658, %v651
      %v708 = vpack.c.b16 %v659, %v652
      %v849 = vunpack.c.l.b16 %v396
      %v850 = vunpack.c.h.b16 %v396
      %v851 = vunpack.c.l.b16 %v397
      %v852 = vunpack.c.h.b16 %v397
      %v853 = vunpack.c.l.b16 %v398
      %v854 = vunpack.c.h.b16 %v398
      %v855 = vunpack.c.l.b16 %v399
      %v856 = vunpack.c.h.b16 %v399
      %v857 = vunpack.c.l.b16 %v400
      %v858 = vunpack.c.h.b16 %v400
      %v859 = vunpack.c.l.b16 %v401
      %v860 = vunpack.c.h.b16 %v401
      %v861 = vunpack.c.l.b16 %v402
      %v862 = vunpack.c.h.b16 %v402
      %v863 = vunpack.c.l.b16 %v403
      %v864 = vunpack.c.h.b16 %v403
      %v865 = vunpack.c.l.b16 %v404
      %v866 = vunpack.c.h.b16 %v404
      %v867 = vunpack.c.l.b16 %v405
      %v868 = vunpack.c.h.b16 %v405
      %v869 = vunpack.c.l.b16 %v406
      %v870 = vunpack.c.h.b16 %v406
      %v871 = vunpack.c.l.b16 %v407
      %v872 = vunpack.c.h.b16 %v407
      %v873 = vunpack.c.l.b16 %v408
      %v874 = vunpack.c.h.b16 %v408
      %v875 = vunpack.c.l.b16 %v409
      %v876 = vunpack.c.h.b16 %v409
      %v877 = vunpack.c.l.b16 %v410
      %v878 = vunpack.c.h.b16 %v410
      %v879 = vunpack.c.l.b16 %v411
      %v880 = vunpack.c.h.b16 %v411
      %v881 = vunpack.c.l.b16 %v412
      %v882 = vunpack.c.h.b16 %v412
      %v883 = vunpack.c.l.b16 %v413
      %v884 = vunpack.c.h.b16 %v413
      %v885 = vunpack.c.l.b16 %v414
      %v886 = vunpack.c.h.b16 %v414
      %v887 = vunpack.c.l.b16 %v415
      %v888 = vunpack.c.h.b16 %v415
      %v889 = vunpack.c.l.b16 %v416
      %v890 = vunpack.c.h.b16 %v416
      %v891 = vunpack.c.l.b16 %v417
      %v892 = vunpack.c.h.b16 %v417
      %v893 = vunpack.c.l.b16 %v418
      %v894 = vunpack.c.h.b16 %v418
      %v895 = vunpack.c.l.b16 %v419
      %v896 = vunpack.c.h.b16 %v419
      %v897 = vunpack.c.l.b16 %v420
      %v898 = vunpack.c.h.b16 %v420
      %v899 = vunpack.c.l.b16 %v421
      %v900 = vunpack.c.h.b16 %v421
      %v901 = vunpack.c.l.b16 %v422
      %v902 = vunpack.c.h.b16 %v422
      %v903 = vunpack.c.l.b16 %v423
      %v904 = vunpack.c.h.b16 %v423
      %v905 = vunpack.c.l.b16 %v424
      %v906 = vunpack.c.h.b16 %v424
      %v907 = vunpack.c.l.b16 %v425
      %v908 = vunpack.c.h.b16 %v425
      %v909 = vunpack.c.l.b16 %v426
      %v910 = vunpack.c.h.b16 %v426
      %v911 = vunpack.c.l.b16 %v427
      %v912 = vunpack.c.h.b16 %v427
      %v913 = vunpack.c.l.b16 %v428
      %v914 = vunpack.c.h.b16 %v428
      %v915 = vunpack.c.l.b16 %v429
      %v916 = vunpack.c.h.b16 %v429
      %v917 = vunpack.c.l.b16 %v430
      %v918 = vunpack.c.h.b16 %v430
      %v919 = vunpack.c.l.b16 %v431
      %v920 = vunpack.c.h.b16 %v431
      %v921 = vunpack.c.l.b16 %v432
      %v922 = vunpack.c.h.b16 %v432
      %v923 = vunpack.c.l.b16 %v433
      %v924 = vunpack.c.h.b16 %v433
      %v925 = vunpack.c.l.b16 %v434
      %v926 = vunpack.c.h.b16 %v434
      %v927 = vunpack.c.l.b16 %v435
      %v928 = vunpack.c.h.b16 %v435
      %v929 = vunpack.c.l.b16 %v436
      %v930 = vunpack.c.h.b16 %v436
      %v931 = vunpack.c.l.b16 %v437
      %v932 = vunpack.c.h.b16 %v437
      %v933 = vunpack.c.l.b16 %v438
      %v934 = vunpack.c.h.b16 %v438
      %v935 = vunpack.c.l.b16 %v439
      %v936 = vunpack.c.h.b16 %v439
      %v937 = vunpack.c.l.b16 %v440
      %v938 = vunpack.c.h.b16 %v440
      %v939 = vunpack.c.l.b16 %v441
      %v940 = vunpack.c.h.b16 %v441
      %v941 = vunpack.c.l.b16 %v442
      %v942 = vunpack.c.h.b16 %v442
      %v943 = vunpack.c.l.b16 %v443
      %v944 = vunpack.c.h.b16 %v443
      %v945 = vunpack.c.l.b16 %v444
      %v946 = vunpack.c.h.b16 %v444
      %v947 = vunpack.c.l.b16 %v445
      %v948 = vunpack.c.h.b16 %v445
      %v949 = vunpack.c.l.b16 %v446
      %v950 = vunpack.c.h.b16 %v446
      %v951 = vunpack.c.l.b16 %v447
      %v952 = vunpack.c.h.b16 %v447
      %v953 = vunpack.c.l.b16 %v448
      %v954 = vunpack.c.h.b16 %v448
      %v955 = vunpack.c.l.b16 %v449
      %v956 = vunpack.c.h.b16 %v449
      %v957 = vunpack.c.l.b16 %v450
      %v958 = vunpack.c.h.b16 %v450
      %v959 = vunpack.c.l.b16 %v451
      %v960 = vunpack.c.h.b16 %v451
      %v961 = vunpack.c.l.b16 %v452
      %v962 = vunpack.c.h.b16 %v452
      %v963 = vunpack.c.l.b16 %v453
      %v964 = vunpack.c.h.b16 %v453
      %v965 = vunpack.c.l.b16 %v454
      %v966 = vunpack.c.h.b16 %v454
      %v967 = vunpack.c.l.b16 %v455
      %v968 = vunpack.c.h.b16 %v455
      %v969 = vunpack.c.l.b16 %v456
      %v970 = vunpack.c.h.b16 %v456
      %v971 = vunpack.c.l.b16 %v457
      %v972 = vunpack.c.h.b16 %v457
      %v973 = vunpack.c.l.b16 %v458
      %v974 = vunpack.c.h.b16 %v458
      %v975 = vunpack.c.l.b16 %v459
      %v976 = vunpack.c.h.b16 %v459
      %v977 = vunpack.c.l.b16 %v460
      %v978 = vunpack.c.h.b16 %v460
      %v979 = vunpack.c.l.b16 %v461
      %v980 = vunpack.c.h.b16 %v461
      %v981 = vunpack.c.l.b16 %v462
      %v982 = vunpack.c.h.b16 %v462
      %v983 = vunpack.c.l.b16 %v463
      %v984 = vunpack.c.h.b16 %v463
      %v985 = vunpack.c.l.b16 %v464
      %v986 = vunpack.c.h.b16 %v464
      %v987 = vunpack.c.l.b16 %v465
      %v988 = vunpack.c.h.b16 %v465
      %v989 = vunpack.c.l.b16 %v466
      %v990 = vunpack.c.h.b16 %v466
      %v991 = vunpack.c.l.b16 %v467
      %v992 = vunpack.c.h.b16 %v467
      %v993 = vunpack.c.l.b16 %v468
      %v994 = vunpack.c.h.b16 %v468
      %v995 = vunpack.c.l.b16 %v469
      %v996 = vunpack.c.h.b16 %v469
      %v997 = vunpack.c.l.b16 %v470
      %v998 = vunpack.c.h.b16 %v470
      %v999 = vunpack.c.l.b16 %v471
      %v1000 = vunpack.c.h.b16 %v471
      %v1001 = vunpack.c.l.b16 %v472
      %v1002 = vunpack.c.h.b16 %v472
      %v1003 = vunpack.c.l.b16 %v473
      %v1004 = vunpack.c.h.b16 %v473
      %v1005 = vunpack.c.l.b16 %v474
      %v1006 = vunpack.c.h.b16 %v474
      %v1007 = vunpack.c.l.b16 %v475
      %v1008 = vunpack.c.h.b16 %v475
      %v1009 = vunpack.c.l.b16 %v476
      %v1010 = vunpack.c.h.b16 %v476
      %v1011 = vunpack.c.l.b16 %v477
      %v1012 = vunpack.c.h.b16 %v477
      %v1013 = vunpack.c.l.b16 %v478
      %v1014 = vunpack.c.h.b16 %v478
      %v1015 = vunpack.c.l.b16 %v479
      %v1016 = vunpack.c.h.b16 %v479
      %v1017 = vunpack.c.l.b16 %v480
      %v1018 = vunpack.c.h.b16 %v480
      %v1019 = vunpack.c.l.b16 %v481
      %v1020 = vunpack.c.h.b16 %v481
      %v1021 = vunpack.c.l.b16 %v482
      %v1022 = vunpack.c.h.b16 %v482
      %v1023 = vunpack.c.l.b16 %v483
      %v1024 = vunpack.c.h.b16 %v483
      %v1025 = vunpack.c.l.b16 %v484
      %v1026 = vunpack.c.h.b16 %v484
      %v1027 = vunpack.c.l.b16 %v485
      %v1028 = vunpack.c.h.b16 %v485
      %v1029 = vunpack.c.l.b16 %v486
      %v1030 = vunpack.c.h.b16 %v486
      %v1031 = vunpack.c.l.b16 %v487
      %v1032 = vunpack.c.h.b16 %v487
      %v1033 = vunpack.c.l.b16 %v488
      %v1034 = vunpack.c.h.b16 %v488
      %v1035 = vunpack.c.l.b16 %v489
      %v1036 = vunpack.c.h.b16 %v489
      %v1037 = vunpack.c.l.b16 %v490
      %v1038 = vunpack.c.h.b16 %v490
      %v1039 = vunpack.c.l.b16 %v491
      %v1040 = vunpack.c.h.b16 %v491
      %v1041 = vunpack.c.l.b16 %v492
      %v1042 = vunpack.c.h.b16 %v492
      %v1043 = vunpack.c.l.b16 %v493
      %v1044 = vunpack.c.h.b16 %v493
      %v1045 = vpack.c.b16 %v851, %v849
      %v1046 = vpack.c.b16 %v852, %v850
      %v1047 = vpack.c.b16 %v855, %v853
      %v1048 = vpack.c.b16 %v856, %v854
      %v1049 = vpack.c.b16 %v859, %v857
      %v1050 = vpack.c.b16 %v860, %v858
      %v1051 = vpack.c.b16 %v863, %v861
      %v1052 = vpack.c.b16 %v864, %v862
      %v1053 = vpack.c.b16 %v867, %v865
      %v1054 = vpack.c.b16 %v868, %v866
      %v1055 = vpack.c.b16 %v871, %v869
      %v1056 = vpack.c.b16 %v872, %v870
      %v1057 = vpack.c.b16 %v875, %v873
      %v1058 = vpack.c.b16 %v876, %v874
      %v1059 = vpack.c.b16 %v879, %v877
      %v1060 = vpack.c.b16 %v880, %v878
      %v1061 = vpack.c.b16 %v883, %v881
      %v1062 = vpack.c.b16 %v884, %v882
      %v1063 = vpack.c.b16 %v887, %v885
      %v1064 = vpack.c.b16 %v888, %v886
      %v1065 = vpack.c.b16 %v891, %v889
      %v1066 = vpack.c.b16 %v892, %v890
      %v1067 = vpack.c.b16 %v895, %v893
      %v1068 = vpack.c.b16 %v896, %v894
      %v1069 = vpack.c.b16 %v899, %v897
      %v1070 = vpack.c.b16 %v900, %v898
      %v1071 = vpack.c.b16 %v903, %v901
      %v1072 = vpack.c.b16 %v904, %v902
      %v1073 = vpack.c.b16 %v907, %v905
      %v1074 = vpack.c.b16 %v908, %v906
      %v1075 = vpack.c.b16 %v911, %v909
      %v1076 = vpack.c.b16 %v912, %v910
      %v1077 = vpack.c.b16 %v915, %v913
      %v1078 = vpack.c.b16 %v916, %v914
      %v1079 = vpack.c.b16 %v919, %v917
      %v1080 = vpack.c.b16 %v920, %v918
      %v1081 = vpack.c.b16 %v923, %v921
      %v1082 = vpack.c.b16 %v924, %v922
      %v1083 = vpack.c.b16 %v927, %v925
      %v1084 = vpack.c.b16 %v928, %v926
      %v1085 = vpack.c.b16 %v931, %v929
      %v1086 = vpack.c.b16 %v932, %v930
      %v1087 = vpack.c.b16 %v935, %v933
      %v1088 = vpack.c.b16 %v936, %v934
      %v1089 = vpack.c.b16 %v939, %v937
      %v1090 = vpack.c.b16 %v940, %v938
      %v1091 = vpack.c.b16 %v943, %v941
      %v1092 = vpack.c.b16 %v944, %v942
      %v1093 = vpack.c.b16 %v947, %v945
      %v1094 = vpack.c.b16 %v948, %v946
      %v1095 = vpack.c.b16 %v951, %v949
      %v1096 = vpack.c.b16 %v952, %v950
      %v1097 = vpack.c.b16 %v955, %v953
      %v1098 = vpack.c.b16 %v956, %v954
      %v1099 = vpack.c.b16 %v959, %v957
      %v1100 = vpack.c.b16 %v960, %v958
      %v1101 = vpack.c.b16 %v963, %v961
      %v1102 = vpack.c.b16 %v964, %v962
      %v1103 = vpack.c.b16 %v967, %v965
      %v1104 = vpack.c.b16 %v968, %v966
      %v1105 = vpack.c.b16 %v971, %v969
      %v1106 = vpack.c.b16 %v972, %v970
      %v1107 = vpack.c.b16 %v975, %v973
      %v1108 = vpack.c.b16 %v976, %v974
      %v1109 = vpack.c.b16 %v979, %v977
      %v1110 = vpack.c.b16 %v980, %v978
      %v1111 = vpack.c.b16 %v983, %v981
      %v1112 = vpack.c.b16 %v984, %v982
      %v1113 = vpack.c.b16 %v987, %v985
      %v1114 = vpack.c.b16 %v988, %v986
      %v1115 = vpack.c.b16 %v991, %v989
      %v1116 = vpack.c.b16 %v992, %v990
      %v1117 = vpack.c.b16 %v995, %v993
      %v1118 = vpack.c.b16 %v996, %v994
      %v1119 = vpack.c.b16 %v999, %v997
      %v1120 = vpack.c.b16 %v1000, %v998
      %v1121 = vpack.c.b16 %v1003, %v1001
      %v1122 = vpack.c.b16 %v1004, %v1002
      %v1123 = vpack.c.b16 %v1007, %v1005
      %v1124 = vpack.c.b16 %v1008, %v1006
      %v1125 = vpack.c.b16 %v1011, %v1009
      %v1126 = vpack.c.b16 %v1012, %v1010
      %v1127 = vpack.c.b16 %v1015, %v1013
      %v1128 = vpack.c.b16 %v1016, %v1014
      %v1129 = vpack.c.b16 %v1019, %v1017
      %v1130 = vpack.c.b16 %v1020, %v1018
      %v1131 = vpack.c.b16 %v1023, %v1021
      %v1132 = vpack.c.b16 %v1024, %v1022
      %v1133 = vpack.c.b16 %v1027, %v1025
      %v1134 = vpack.c.b16 %v1028, %v1026
      %v1135 = vpack.c.b16 %v1031, %v1029
      %v1136 = vpack.c.b16 %v1032, %v1030
      %v1137 = vpack.c.b16 %v1035, %v1033
      %v1138 = vpack.c.b16 %v1036, %v1034
      %v1139 = vpack.c.b16 %v1039, %v1037
      %v1140 = vpack.c.b16 %v1040, %v1038
      %v1141 = vpack.c.b16 %v1043, %v1041
      %v1142 = vpack.c.b16 %v1044, %v1042
      %vm1241 = vcmask 130048
      %v1243 = vsel %vm1241, %v666, 0
      %v1246 = vsel %vm1241, %v673, 0
      %v1249 = vsel %vm1241, %v680, 0
      %v1252 = vsel %vm1241, %v687, 0
      %v1255 = vsel %vm1241, %v694, 0
      %v1258 = vsel %vm1241, %v701, 0
      %v1261 = vsel %vm1241, %v708, 0
      %1263 = vmatprep.subr.bf16.mxu0 %v1046
      %1264 = vmatpush1.bf16.msra.mxu0 %v1045
      %1265 = vmatprep.subr.bf16.mxu0 %v1048
      %1266 = vmatpush1.bf16.msra.mxu0 %v1047
      %1267 = vmatprep.subr.bf16.mxu0 %v1050
      %1268 = vmatpush1.bf16.msra.mxu0 %v1049
      %1269 = vmatprep.subr.bf16.mxu0 %v1052
      %1270 = vmatpush1.bf16.msra.mxu0 %v1051
      %1271 = vmatprep.subr.bf16.mxu0 %v1054
      %1272 = vmatpush1.bf16.msra.mxu0 %v1053
      %1273 = vmatprep.subr.bf16.mxu0 %v1056
      %1274 = vmatpush1.bf16.msra.mxu0 %v1055
      %1275 = vmatprep.subr.bf16.mxu0 %v1058
      %1276 = vmatpush1.bf16.msra.mxu0 %v1057
      %1277 = vmatprep.subr.bf16.mxu0 %v1060
      %1278 = vmatpush1.bf16.msra.mxu0 %v1059
      %1279 = vmatprep.subr.bf16.mxu0 %v1062
      %1280 = vmatpush1.bf16.msra.mxu0 %v1061
      %1281 = vmatprep.subr.bf16.mxu0 %v1064
      %1282 = vmatpush1.bf16.msra.mxu0 %v1063
      %1283 = vmatprep.subr.bf16.mxu0 %v1066
      %1284 = vmatpush1.bf16.msra.mxu0 %v1065
      %1285 = vmatprep.subr.bf16.mxu0 %v1068
      %1286 = vmatpush1.bf16.msra.mxu0 %v1067
      %1287 = vmatprep.subr.bf16.mxu0 %v1070
      %1288 = vmatpush1.bf16.msra.mxu0 %v1069
      %1289 = vmatprep.subr.bf16.mxu0 %v1072
      %1290 = vmatpush1.bf16.msra.mxu0 %v1071
      %1291 = vmatprep.subr.bf16.mxu0 %v1074
      %1292 = vmatpush1.bf16.msra.mxu0 %v1073
      %1293 = vmatprep.subr.bf16.mxu0 %v1076
      %1294 = vmatpush1.bf16.msra.mxu0 %v1075
      %1295 = vmatprep.mubr.bf16.mxu0 %v661
      %1296 = vmatmul.mubr.bf16.gmra.mrb[0].mxu0 %v660
      %v1297 = vpop.f32.mrb[0].mxu0
      %v1298 = vadd.f32 %v499, %v1297
      %v1299 = vpop.f32.mrb[0].mxu0
      %v1300 = vadd.f32 %v503, %v1299
      %v1301 = vpop.f32.mrb[0].mxu0
      %v1302 = vadd.f32 %v499, %v1301
      %v1303 = vpop.f32.mrb[0].mxu0
      %v1304 = vadd.f32 %v503, %v1303
      %1305 = vmatprep.mubr.bf16.mxu0 %v668
      %1306 = vmatmul.mubr.bf16.gmra.mrb[0].mxu0 %v667
      %v1307 = vpop.f32.mrb[0].mxu0
      %v1308 = vadd.f32 %v499, %v1307
      %v1309 = vpop.f32.mrb[0].mxu0
      %v1310 = vadd.f32 %v503, %v1309
      %v1311 = vpop.f32.mrb[0].mxu0
      %v1312 = vadd.f32 %v499, %v1311
      %v1313 = vpop.f32.mrb[0].mxu0
      %v1314 = vadd.f32 %v503, %v1313
      %1315 = vmatprep.mubr.bf16.mxu0 %v675
      %1316 = vmatmul.mubr.bf16.gmra.mrb[0].mxu0 %v674
      %v1317 = vpop.f32.mrb[0].mxu0
      %v1318 = vadd.f32 %v499, %v1317
      %v1319 = vpop.f32.mrb[0].mxu0
      %v1320 = vadd.f32 %v503, %v1319
      %v1321 = vpop.f32.mrb[0].mxu0
      %v1322 = vadd.f32 %v499, %v1321
      %v1323 = vpop.f32.mrb[0].mxu0
      %v1324 = vadd.f32 %v503, %v1323
      %1325 = vmatprep.mubr.bf16.mxu0 %v682
      %1326 = vmatmul.mubr.bf16.gmra.mrb[0].mxu0 %v681
      %v1327 = vpop.f32.mrb[0].mxu0
      %v1328 = vadd.f32 %v499, %v1327
      %v1329 = vpop.f32.mrb[0].mxu0
      %v1330 = vadd.f32 %v503, %v1329
      %v1331 = vpop.f32.mrb[0].mxu0
      %v1332 = vadd.f32 %v499, %v1331
      %v1333 = vpop.f32.mrb[0].mxu0
      %v1334 = vadd.f32 %v503, %v1333
      %1335 = vmatprep.mubr.bf16.mxu0 %v689
      %1336 = vmatmul.mubr.bf16.gmra.mrb[0].mxu0 %v688
      %v1337 = vpop.f32.mrb[0].mxu0
      %v1338 = vadd.f32 %v499, %v1337
      %v1339 = vpop.f32.mrb[0].mxu0
      %v1340 = vadd.f32 %v503, %v1339
      %v1341 = vpop.f32.mrb[0].mxu0
      %v1342 = vadd.f32 %v499, %v1341
      %v1343 = vpop.f32.mrb[0].mxu0
      %v1344 = vadd.f32 %v503, %v1343
      %1345 = vmatprep.mubr.bf16.mxu0 %v696
      %1346 = vmatmul.mubr.bf16.gmra.mrb[0].mxu0 %v695
      %v1347 = vpop.f32.mrb[0].mxu0
      %v1348 = vadd.f32 %v499, %v1347
      %v1349 = vpop.f32.mrb[0].mxu0
      %v1350 = vadd.f32 %v503, %v1349
      %v1351 = vpop.f32.mrb[0].mxu0
      %v1352 = vadd.f32 %v499, %v1351
      %v1353 = vpop.f32.mrb[0].mxu0
      %v1354 = vadd.f32 %v503, %v1353
      %1355 = vmatprep.mubr.bf16.mxu0 %v703
      %1356 = vmatmul.mubr.bf16.gmra.mrb[0].mxu0 %v702
      %v1357 = vpop.f32.mrb[0].mxu0
      %v1358 = vadd.f32 %v499, %v1357
      %v1359 = vpop.f32.mrb[0].mxu0
      %v1360 = vadd.f32 %v503, %v1359
      %v1361 = vpop.f32.mrb[0].mxu0
      %v1362 = vadd.f32 %v499, %v1361
      %v1363 = vpop.f32.mrb[0].mxu0
      %v1364 = vadd.f32 %v503, %v1363
      %1365 = vdwg.mxu0
      %1366 = vmatprep.subr.bf16.mxu0 %v1078
      %1367 = vmatpush1.bf16.msra.mxu0 %v1077
      %1368 = vmatprep.subr.bf16.mxu0 %v1080
      %1369 = vmatpush1.bf16.msra.mxu0 %v1079
      %1370 = vmatprep.subr.bf16.mxu0 %v1082
      %1371 = vmatpush1.bf16.msra.mxu0 %v1081
      %1372 = vmatprep.subr.bf16.mxu0 %v1084
      %1373 = vmatpush1.bf16.msra.mxu0 %v1083
      %1374 = vmatprep.subr.bf16.mxu0 %v1086
      %1375 = vmatpush1.bf16.msra.mxu0 %v1085
      %1376 = vmatprep.subr.bf16.mxu0 %v1088
      %1377 = vmatpush1.bf16.msra.mxu0 %v1087
      %1378 = vmatprep.subr.bf16.mxu0 %v1090
      %1379 = vmatpush1.bf16.msra.mxu0 %v1089
      %1380 = vmatprep.subr.bf16.mxu0 %v1092
      %1381 = vmatpush1.bf16.msra.mxu0 %v1091
      %1382 = vmatprep.subr.bf16.mxu0 %v1094
      %1383 = vmatpush1.bf16.msra.mxu0 %v1093
      %1384 = vmatprep.subr.bf16.mxu0 %v1096
      %1385 = vmatpush1.bf16.msra.mxu0 %v1095
      %1386 = vmatprep.subr.bf16.mxu0 %v1098
      %1387 = vmatpush1.bf16.msra.mxu0 %v1097
      %1388 = vmatprep.subr.bf16.mxu0 %v1100
      %1389 = vmatpush1.bf16.msra.mxu0 %v1099
      %1390 = vmatprep.subr.bf16.mxu0 %v1102
      %1391 = vmatpush1.bf16.msra.mxu0 %v1101
      %1392 = vmatprep.subr.bf16.mxu0 %v1104
      %1393 = vmatpush1.bf16.msra.mxu0 %v1103
      %1394 = vmatprep.subr.bf16.mxu0 %v1106
      %1395 = vmatpush1.bf16.msra.mxu0 %v1105
      %1396 = vmatprep.subr.bf16.mxu0 %v1108
      %1397 = vmatpush1.bf16.msra.mxu0 %v1107
      %1398 = vmatprep.mubr.bf16.mxu0 %v663
      %1399 = vmatmul.mubr.bf16.gmra.mrb[0].mxu0 %v662
      %v1400 = vpop.f32.mrb[0].mxu0
      %v1401 = vadd.f32 %v1298, %v1400
      %v1402 = vpop.f32.mrb[0].mxu0
      %v1403 = vadd.f32 %v1300, %v1402
      %v1404 = vpop.f32.mrb[0].mxu0
      %v1405 = vadd.f32 %v1302, %v1404
      %v1406 = vpop.f32.mrb[0].mxu0
      %v1407 = vadd.f32 %v1304, %v1406
      %1408 = vmatprep.mubr.bf16.mxu0 %v670
      %1409 = vmatmul.mubr.bf16.gmra.mrb[0].mxu0 %v669
      %v1410 = vpop.f32.mrb[0].mxu0
      %v1411 = vadd.f32 %v1308, %v1410
      %v1412 = vpop.f32.mrb[0].mxu0
      %v1413 = vadd.f32 %v1310, %v1412
      %v1414 = vpop.f32.mrb[0].mxu0
      %v1415 = vadd.f32 %v1312, %v1414
      %v1416 = vpop.f32.mrb[0].mxu0
      %v1417 = vadd.f32 %v1314, %v1416
      %1418 = vmatprep.mubr.bf16.mxu0 %v677
      %1419 = vmatmul.mubr.bf16.gmra.mrb[0].mxu0 %v676
      %v1420 = vpop.f32.mrb[0].mxu0
      %v1421 = vadd.f32 %v1318, %v1420
      %v1422 = vpop.f32.mrb[0].mxu0
      %v1423 = vadd.f32 %v1320, %v1422
      %v1424 = vpop.f32.mrb[0].mxu0
      %v1425 = vadd.f32 %v1322, %v1424
      %v1426 = vpop.f32.mrb[0].mxu0
      %v1427 = vadd.f32 %v1324, %v1426
      %1428 = vmatprep.mubr.bf16.mxu0 %v684
      %1429 = vmatmul.mubr.bf16.gmra.mrb[0].mxu0 %v683
      %v1430 = vpop.f32.mrb[0].mxu0
      %v1431 = vadd.f32 %v1328, %v1430
      %v1432 = vpop.f32.mrb[0].mxu0
      %v1433 = vadd.f32 %v1330, %v1432
      %v1434 = vpop.f32.mrb[0].mxu0
      %v1435 = vadd.f32 %v1332, %v1434
      %v1436 = vpop.f32.mrb[0].mxu0
      %v1437 = vadd.f32 %v1334, %v1436
      %1438 = vmatprep.mubr.bf16.mxu0 %v691
      %1439 = vmatmul.mubr.bf16.gmra.mrb[0].mxu0 %v690
      %v1440 = vpop.f32.mrb[0].mxu0
      %v1441 = vadd.f32 %v1338, %v1440
      %v1442 = vpop.f32.mrb[0].mxu0
      %v1443 = vadd.f32 %v1340, %v1442
      %v1444 = vpop.f32.mrb[0].mxu0
      %v1445 = vadd.f32 %v1342, %v1444
      %v1446 = vpop.f32.mrb[0].mxu0
      %v1447 = vadd.f32 %v1344, %v1446
      %1448 = vmatprep.mubr.bf16.mxu0 %v698
      %1449 = vmatmul.mubr.bf16.gmra.mrb[0].mxu0 %v697
      %v1450 = vpop.f32.mrb[0].mxu0
      %v1451 = vadd.f32 %v1348, %v1450
      %v1452 = vpop.f32.mrb[0].mxu0
      %v1453 = vadd.f32 %v1350, %v1452
      %v1454 = vpop.f32.mrb[0].mxu0
      %v1455 = vadd.f32 %v1352, %v1454
      %v1456 = vpop.f32.mrb[0].mxu0
      %v1457 = vadd.f32 %v1354, %v1456
      %1458 = vmatprep.mubr.bf16.mxu0 %v705
      %1459 = vmatmul.mubr.bf16.gmra.mrb[0].mxu0 %v704
      %v1460 = vpop.f32.mrb[0].mxu0
      %v1461 = vadd.f32 %v1358, %v1460
      %v1462 = vpop.f32.mrb[0].mxu0
      %v1463 = vadd.f32 %v1360, %v1462
      %v1464 = vpop.f32.mrb[0].mxu0
      %v1465 = vadd.f32 %v1362, %v1464
      %v1466 = vpop.f32.mrb[0].mxu0
      %v1467 = vadd.f32 %v1364, %v1466
      %1468 = vdwg.mxu0
      %1469 = vmatprep.subr.bf16.mxu0 %v1110
      %1470 = vmatpush1.bf16.msra.mxu0 %v1109
      %1471 = vmatprep.subr.bf16.mxu0 %v1112
      %1472 = vmatpush1.bf16.msra.mxu0 %v1111
      %1473 = vmatprep.subr.bf16.mxu0 %v1114
      %1474 = vmatpush1.bf16.msra.mxu0 %v1113
      %1475 = vmatprep.subr.bf16.mxu0 %v1116
      %1476 = vmatpush1.bf16.msra.mxu0 %v1115
      %1477 = vmatprep.subr.bf16.mxu0 %v1118
      %1478 = vmatpush1.bf16.msra.mxu0 %v1117
      %1479 = vmatprep.subr.bf16.mxu0 %v1120
      %1480 = vmatpush1.bf16.msra.mxu0 %v1119
      %1481 = vmatprep.subr.bf16.mxu0 %v1122
      %1482 = vmatpush1.bf16.msra.mxu0 %v1121
      %1483 = vmatprep.subr.bf16.mxu0 %v1124
      %1484 = vmatpush1.bf16.msra.mxu0 %v1123
      %1485 = vmatprep.subr.bf16.mxu0 %v1126
      %1486 = vmatpush1.bf16.msra.mxu0 %v1125
      %1487 = vmatprep.subr.bf16.mxu0 %v1128
      %1488 = vmatpush1.bf16.msra.mxu0 %v1127
      %1489 = vmatprep.subr.bf16.mxu0 %v1130
      %1490 = vmatpush1.bf16.msra.mxu0 %v1129
      %1491 = vmatprep.subr.bf16.mxu0 %v1132
      %1492 = vmatpush1.bf16.msra.mxu0 %v1131
      %1493 = vmatprep.subr.bf16.mxu0 %v1134
      %1494 = vmatpush1.bf16.msra.mxu0 %v1133
      %1495 = vmatprep.subr.bf16.mxu0 %v1136
      %1496 = vmatpush1.bf16.msra.mxu0 %v1135
      %1497 = vmatprep.subr.bf16.mxu0 %v1138
      %1498 = vmatpush1.bf16.msra.mxu0 %v1137
      %1499 = vmatprep.subr.bf16.mxu0 %v1140
      %1500 = vmatpush1.bf16.msra.mxu0 %v1139
      %1501 = vmatprep.mubr.bf16.mxu0 %v665
      %1502 = vmatmul.mubr.bf16.gmra.mrb[0].mxu0 %v664
      %v1503 = vpop.f32.mrb[0].mxu0
      %v1504 = vadd.f32 %v1401, %v1503
      %v1505 = vpop.f32.mrb[0].mxu0
      %v1506 = vadd.f32 %v1403, %v1505
      %v1507 = vpop.f32.mrb[0].mxu0
      %v1508 = vadd.f32 %v1405, %v1507
      %v1509 = vpop.f32.mrb[0].mxu0
      %v1510 = vadd.f32 %v1407, %v1509
      %1511 = vmatprep.mubr.bf16.mxu0 %v672
      %1512 = vmatmul.mubr.bf16.gmra.mrb[0].mxu0 %v671
      %v1513 = vpop.f32.mrb[0].mxu0
      %v1514 = vadd.f32 %v1411, %v1513
      %v1515 = vpop.f32.mrb[0].mxu0
      %v1516 = vadd.f32 %v1413, %v1515
      %v1517 = vpop.f32.mrb[0].mxu0
      %v1518 = vadd.f32 %v1415, %v1517
      %v1519 = vpop.f32.mrb[0].mxu0
      %v1520 = vadd.f32 %v1417, %v1519
      %1521 = vmatprep.mubr.bf16.mxu0 %v679
      %1522 = vmatmul.mubr.bf16.gmra.mrb[0].mxu0 %v678
      %v1523 = vpop.f32.mrb[0].mxu0
      %v1524 = vadd.f32 %v1421, %v1523
      %v1525 = vpop.f32.mrb[0].mxu0
      %v1526 = vadd.f32 %v1423, %v1525
      %v1527 = vpop.f32.mrb[0].mxu0
      %v1528 = vadd.f32 %v1425, %v1527
      %v1529 = vpop.f32.mrb[0].mxu0
      %v1530 = vadd.f32 %v1427, %v1529
      %1531 = vmatprep.mubr.bf16.mxu0 %v686
      %1532 = vmatmul.mubr.bf16.gmra.mrb[0].mxu0 %v685
      %v1533 = vpop.f32.mrb[0].mxu0
      %v1534 = vadd.f32 %v1431, %v1533
      %v1535 = vpop.f32.mrb[0].mxu0
      %v1536 = vadd.f32 %v1433, %v1535
      %v1537 = vpop.f32.mrb[0].mxu0
      %v1538 = vadd.f32 %v1435, %v1537
      %v1539 = vpop.f32.mrb[0].mxu0
      %v1540 = vadd.f32 %v1437, %v1539
      %1541 = vmatprep.mubr.bf16.mxu0 %v693
      %1542 = vmatmul.mubr.bf16.gmra.mrb[0].mxu0 %v692
      %v1543 = vpop.f32.mrb[0].mxu0
      %v1544 = vadd.f32 %v1441, %v1543
      %v1545 = vpop.f32.mrb[0].mxu0
      %v1546 = vadd.f32 %v1443, %v1545
      %v1547 = vpop.f32.mrb[0].mxu0
      %v1548 = vadd.f32 %v1445, %v1547
      %v1549 = vpop.f32.mrb[0].mxu0
      %v1550 = vadd.f32 %v1447, %v1549
      %1551 = vmatprep.mubr.bf16.mxu0 %v700
      %1552 = vmatmul.mubr.bf16.gmra.mrb[0].mxu0 %v699
      %v1553 = vpop.f32.mrb[0].mxu0
      %v1554 = vadd.f32 %v1451, %v1553
      %v1555 = vpop.f32.mrb[0].mxu0
      %v1556 = vadd.f32 %v1453, %v1555
      %v1557 = vpop.f32.mrb[0].mxu0
      %v1558 = vadd.f32 %v1455, %v1557
      %v1559 = vpop.f32.mrb[0].mxu0
      %v1560 = vadd.f32 %v1457, %v1559
      %1561 = vmatprep.mubr.bf16.mxu0 %v707
      %1562 = vmatmul.mubr.bf16.gmra.mrb[0].mxu0 %v706
      %v1563 = vpop.f32.mrb[0].mxu0
      %v1564 = vadd.f32 %v1461, %v1563
      %v1565 = vpop.f32.mrb[0].mxu0
      %v1566 = vadd.f32 %v1463, %v1565
      %v1567 = vpop.f32.mrb[0].mxu0
      %v1568 = vadd.f32 %v1465, %v1567
      %v1569 = vpop.f32.mrb[0].mxu0
      %v1570 = vadd.f32 %v1467, %v1569
      %1571 = vdwg.mxu0
      %1572 = vmatprep.subr.bf16.mxu0 %v1142
      %1573 = vmatpush1.bf16.msra.mxu0 %v1141
      %1574 = vmatprep.subr.bf16.mxu0 0
      %1575 = vmatpush1.bf16.msra.mxu0 0
      %1576 = vmatprep.subr.bf16.mxu0 0
      %1577 = vmatpush1.bf16.msra.mxu0 0
      %1578 = vmatprep.subr.bf16.mxu0 0
      %1579 = vmatpush1.bf16.msra.mxu0 0
      %1580 = vmatprep.subr.bf16.mxu0 0
      %1581 = vmatpush1.bf16.msra.mxu0 0
      %1582 = vmatprep.subr.bf16.mxu0 0
      %1583 = vmatpush1.bf16.msra.mxu0 0
      %1584 = vmatprep.subr.bf16.mxu0 0
      %1585 = vmatpush1.bf16.msra.mxu0 0
      %1586 = vmatprep.subr.bf16.mxu0 0
      %1587 = vmatpush1.bf16.msra.mxu0 0
      %1588 = vmatprep.subr.bf16.mxu0 0
      %1589 = vmatpush1.bf16.msra.mxu0 0
      %1590 = vmatprep.subr.bf16.mxu0 0
      %1591 = vmatpush1.bf16.msra.mxu0 0
      %1592 = vmatprep.subr.bf16.mxu0 0
      %1593 = vmatpush1.bf16.msra.mxu0 0
      %1594 = vmatprep.subr.bf16.mxu0 0
      %1595 = vmatpush1.bf16.msra.mxu0 0
      %1596 = vmatprep.subr.bf16.mxu0 0
      %1597 = vmatpush1.bf16.msra.mxu0 0
      %1598 = vmatprep.subr.bf16.mxu0 0
      %1599 = vmatpush1.bf16.msra.mxu0 0
      %1600 = vmatprep.subr.bf16.mxu0 0
      %1601 = vmatpush1.bf16.msra.mxu0 0
      %1602 = vmatprep.subr.bf16.mxu0 0
      %1603 = vmatpush1.bf16.msra.mxu0 0
      %1604 = vmatprep.mubr.bf16.mxu0 0
      %1605 = vmatmul.mubr.bf16.gmra.mrb[0].mxu0 %v1243
      %v1606 = vpop.f32.mrb[0].mxu0
      %v1607 = vadd.f32 %v1504, %v1606
      %v1608 = vpop.f32.mrb[0].mxu0
      %v1609 = vadd.f32 %v1506, %v1608
      %v1610 = vpop.f32.mrb[0].mxu0
      %v1611 = vadd.f32 %v1508, %v1610
      %v1612 = vpop.f32.mrb[0].mxu0
      %v1613 = vadd.f32 %v1510, %v1612
      %1614 = vmatprep.mubr.bf16.mxu0 0
      %1615 = vmatmul.mubr.bf16.gmra.mrb[0].mxu0 %v1246
      %v1616 = vpop.f32.mrb[0].mxu0
      %v1617 = vadd.f32 %v1514, %v1616
      %v1618 = vpop.f32.mrb[0].mxu0
      %v1619 = vadd.f32 %v1516, %v1618
      %v1620 = vpop.f32.mrb[0].mxu0
      %v1621 = vadd.f32 %v1518, %v1620
      %v1622 = vpop.f32.mrb[0].mxu0
      %v1623 = vadd.f32 %v1520, %v1622
      %1624 = vmatprep.mubr.bf16.mxu0 0
      %1625 = vmatmul.mubr.bf16.gmra.mrb[0].mxu0 %v1249
      %v1626 = vpop.f32.mrb[0].mxu0
      %v1627 = vadd.f32 %v1524, %v1626
      %v1628 = vpop.f32.mrb[0].mxu0
      %v1629 = vadd.f32 %v1526, %v1628
      %v1630 = vpop.f32.mrb[0].mxu0
      %v1631 = vadd.f32 %v1528, %v1630
      %v1632 = vpop.f32.mrb[0].mxu0
      %v1633 = vadd.f32 %v1530, %v1632
      %1634 = vmatprep.mubr.bf16.mxu0 0
      %1635 = vmatmul.mubr.bf16.gmra.mrb[0].mxu0 %v1252
      %v1636 = vpop.f32.mrb[0].mxu0
      %v1637 = vadd.f32 %v1534, %v1636
      %v1638 = vpop.f32.mrb[0].mxu0
      %v1639 = vadd.f32 %v1536, %v1638
      %v1640 = vpop.f32.mrb[0].mxu0
      %v1641 = vadd.f32 %v1538, %v1640
      %v1642 = vpop.f32.mrb[0].mxu0
      %v1643 = vadd.f32 %v1540, %v1642
      %1644 = vmatprep.mubr.bf16.mxu0 0
      %1645 = vmatmul.mubr.bf16.gmra.mrb[0].mxu0 %v1255
      %v1646 = vpop.f32.mrb[0].mxu0
      %v1647 = vadd.f32 %v1544, %v1646
      %v1648 = vpop.f32.mrb[0].mxu0
      %v1649 = vadd.f32 %v1546, %v1648
      %v1650 = vpop.f32.mrb[0].mxu0
      %v1651 = vadd.f32 %v1548, %v1650
      %v1652 = vpop.f32.mrb[0].mxu0
      %v1653 = vadd.f32 %v1550, %v1652
      %1654 = vmatprep.mubr.bf16.mxu0 0
      %1655 = vmatmul.mubr.bf16.gmra.mrb[0].mxu0 %v1258
      %v1656 = vpop.f32.mrb[0].mxu0
      %v1657 = vadd.f32 %v1554, %v1656
      %v1658 = vpop.f32.mrb[0].mxu0
      %v1659 = vadd.f32 %v1556, %v1658
      %v1660 = vpop.f32.mrb[0].mxu0
      %v1661 = vadd.f32 %v1558, %v1660
      %v1662 = vpop.f32.mrb[0].mxu0
      %v1663 = vadd.f32 %v1560, %v1662
      %1664 = vmatprep.mubr.bf16.mxu0 0
      %1665 = vmatmul.mubr.bf16.gmra.mrb[0].mxu0 %v1261
      %v1666 = vpop.f32.mrb[0].mxu0
      %v1667 = vadd.f32 %v1564, %v1666
      %v1668 = vpop.f32.mrb[0].mxu0
      %v1669 = vadd.f32 %v1566, %v1668
      %v1670 = vpop.f32.mrb[0].mxu0
      %v1671 = vadd.f32 %v1568, %v1670
      %v1672 = vpop.f32.mrb[0].mxu0
      %v1673 = vadd.f32 %v1570, %v1672
      %1674 = vdwg.mxu0
      %v1675 = vmax.f32 %v1607, 0.0
      %v1676 = vmax.f32 %v1609, 0.0
      %v1677 = vmax.f32 %v1611, 0.0
      %v1678 = vmax.f32 %v1613, 0.0
      %v1679 = vmax.f32 %v1617, 0.0
      %v1680 = vmax.f32 %v1619, 0.0
      %v1681 = vmax.f32 %v1621, 0.0
      %v1682 = vmax.f32 %v1623, 0.0
      %v1683 = vmax.f32 %v1627, 0.0
      %v1684 = vmax.f32 %v1629, 0.0
      %v1685 = vmax.f32 %v1631, 0.0
      %v1686 = vmax.f32 %v1633, 0.0
      %v1687 = vmax.f32 %v1637, 0.0
      %v1688 = vmax.f32 %v1639, 0.0
      %v1689 = vmax.f32 %v1641, 0.0
      %v1690 = vmax.f32 %v1643, 0.0
      %v1691 = vmax.f32 %v1647, 0.0
      %v1692 = vmax.f32 %v1649, 0.0
      %v1693 = vmax.f32 %v1651, 0.0
      %v1694 = vmax.f32 %v1653, 0.0
      %v1695 = vmax.f32 %v1657, 0.0
      %v1696 = vmax.f32 %v1659, 0.0
      %v1697 = vmax.f32 %v1661, 0.0
      %v1698 = vmax.f32 %v1663, 0.0
      %v1699 = vmax.f32 %v1667, 0.0
      %v1700 = vmax.f32 %v1669, 0.0
      %v1701 = vmax.f32 %v1671, 0.0
      %v1702 = vmax.f32 %v1673, 0.0
      %v1703 = vpack.c.bf16 %v1677, %v1675
      %v1704 = vpack.c.bf16 %v1678, %v1676
      %v1705 = vpack.c.bf16 %v1681, %v1679
      %v1706 = vpack.c.bf16 %v1682, %v1680
      %v1707 = vpack.c.bf16 %v1685, %v1683
      %v1708 = vpack.c.bf16 %v1686, %v1684
      %v1709 = vpack.c.bf16 %v1689, %v1687
      %v1710 = vpack.c.bf16 %v1690, %v1688
      %v1711 = vpack.c.bf16 %v1693, %v1691
      %v1712 = vpack.c.bf16 %v1694, %v1692
      %v1713 = vpack.c.bf16 %v1697, %v1695
      %v1714 = vpack.c.bf16 %v1698, %v1696
      %v1715 = vpack.c.bf16 %v1701, %v1699
      %v1716 = vpack.c.bf16 %v1702, %v1700
      %v1717 = vld [vmem:[%s3] sm:$0xf]
      %v1718 = vld [vmem:[%s3 + $0x4] sm:$0xf]
      %v1719 = vld [vmem:[%s3 + $0x8] sm:$0xf]
      %v1720 = vld [vmem:[%s3 + $0xc] sm:$0xf]
      %v1721 = vld [vmem:[%s3 + $0x10] sm:$0xf]
      %v1722 = vld [vmem:[%s3 + $0x14] sm:$0xf]
      %v1723 = vld [vmem:[%s3 + $0x18] sm:$0xf]
      %v1724 = vld [vmem:[%s3 + $0x1c] sm:$0xf]
      %v1725 = vld [vmem:[%s3 + $0x20] sm:$0xf]
      %v1726 = vld [vmem:[%s3 + $0x24] sm:$0xf]
      %v1727 = vld [vmem:[%s3 + $0x28] sm:$0xf]
      %v1728 = vld [vmem:[%s3 + $0x2c] sm:$0xf]
      %v1729 = vld [vmem:[%s3 + $0x30] sm:$0xf]
      %v1730 = vld [vmem:[%s3 + $0x34] sm:$0xf]
      %v1731 = vld [vmem:[%s3 + $0x38] sm:$0xf]
      %v1732 = vld [vmem:[%s3 + $0x3c] sm:$0xf]
      %v1733 = vld [vmem:[%s3 + $0x40] sm:$0xf]
      %v1734 = vld [vmem:[%s3 + $0x44] sm:$0xf]
      %v1735 = vld [vmem:[%s3 + $0x48] sm:$0xf]
      %v1736 = vld [vmem:[%s3 + $0x4c] sm:$0xf]
      %v1737 = vld [vmem:[%s3 + $0x50] sm:$0xf]
      %v1738 = vld [vmem:[%s3 + $0x54] sm:$0xf]
      %v1739 = vld [vmem:[%s3 + $0x58] sm:$0xf]
      %v1740 = vld [vmem:[%s3 + $0x5c] sm:$0xf]
      %v1741 = vld [vmem:[%s3 + $0x60] sm:$0xf]
      %v1742 = vld [vmem:[%s3 + $0x64] sm:$0xf]
      %v1743 = vld [vmem:[%s3 + $0x68] sm:$0xf]
      %v1744 = vld [vmem:[%s3 + $0x6c] sm:$0xf]
      %v1745 = vld [vmem:[%s3 + $0x70] sm:$0xf]
      %v1746 = vld [vmem:[%s3 + $0x74] sm:$0xf]
      %v1747 = vld [vmem:[%s3 + $0x78] sm:$0xf]
      %v1748 = vld [vmem:[%s3 + $0x7c] sm:$0xf]
      %v1749 = vld [vmem:[%s4] sm:$0x1]
      %v1751 = vlaneseq
      %v1752 = vshrl.u32 %v1751, 7
      %v1753 = vsub.s32 0, %v1752
      %v1754 = vrot.slane %v1749, %v1753
      %v1788 = vunpack.c.l.b16 %v1717
      %v1789 = vunpack.c.l.b16 %v1718
      %v1790 = vunpack.c.l.b16 %v1719
      %v1791 = vunpack.c.l.b16 %v1720
      %v1792 = vunpack.c.l.b16 %v1721
      %v1793 = vunpack.c.l.b16 %v1722
      %v1794 = vunpack.c.l.b16 %v1723
      %v1795 = vunpack.c.l.b16 %v1724
      %v1796 = vunpack.c.l.b16 %v1725
      %v1797 = vunpack.c.l.b16 %v1726
      %v1798 = vunpack.c.l.b16 %v1727
      %v1799 = vunpack.c.l.b16 %v1728
      %v1800 = vunpack.c.l.b16 %v1729
      %v1801 = vunpack.c.l.b16 %v1730
      %v1802 = vunpack.c.l.b16 %v1731
      %v1803 = vunpack.c.l.b16 %v1732
      %v1804 = vunpack.c.l.b16 %v1733
      %v1805 = vunpack.c.l.b16 %v1734
      %v1806 = vunpack.c.l.b16 %v1735
      %v1807 = vunpack.c.l.b16 %v1736
      %v1808 = vunpack.c.l.b16 %v1737
      %v1809 = vunpack.c.l.b16 %v1738
      %v1810 = vunpack.c.l.b16 %v1739
      %v1811 = vunpack.c.l.b16 %v1740
      %v1812 = vunpack.c.l.b16 %v1741
      %v1813 = vunpack.c.l.b16 %v1742
      %v1814 = vunpack.c.l.b16 %v1743
      %v1815 = vunpack.c.l.b16 %v1744
      %v1816 = vunpack.c.l.b16 %v1745
      %v1817 = vunpack.c.l.b16 %v1746
      %v1818 = vunpack.c.l.b16 %v1747
      %v1819 = vunpack.c.l.b16 %v1748
      %v1820 = vpack.c.b16 %v1789, %v1788
      %v1821 = vpack.c.b16 %v1791, %v1790
      %v1822 = vpack.c.b16 %v1793, %v1792
      %v1823 = vpack.c.b16 %v1795, %v1794
      %v1824 = vpack.c.b16 %v1797, %v1796
      %v1825 = vpack.c.b16 %v1799, %v1798
      %v1826 = vpack.c.b16 %v1801, %v1800
      %v1827 = vpack.c.b16 %v1803, %v1802
      %v1828 = vpack.c.b16 %v1805, %v1804
      %v1829 = vpack.c.b16 %v1807, %v1806
      %v1830 = vpack.c.b16 %v1809, %v1808
      %v1831 = vpack.c.b16 %v1811, %v1810
      %v1832 = vpack.c.b16 %v1813, %v1812
      %v1833 = vpack.c.b16 %v1815, %v1814
      %v1834 = vpack.c.b16 %v1817, %v1816
      %v1835 = vpack.c.b16 %v1819, %v1818
      %1852 = vmatprep.subr.bf16.mxu0 0
      %1853 = vmatpush1.bf16.msra.mxu0 %v1820
      %1854 = vmatprep.subr.bf16.mxu0 0
      %1855 = vmatpush1.bf16.msra.mxu0 %v1821
      %1856 = vmatprep.subr.bf16.mxu0 0
      %1857 = vmatpush1.bf16.msra.mxu0 %v1822
      %1858 = vmatprep.subr.bf16.mxu0 0
      %1859 = vmatpush1.bf16.msra.mxu0 %v1823
      %1860 = vmatprep.subr.bf16.mxu0 0
      %1861 = vmatpush1.bf16.msra.mxu0 %v1824
      %1862 = vmatprep.subr.bf16.mxu0 0
      %1863 = vmatpush1.bf16.msra.mxu0 %v1825
      %1864 = vmatprep.subr.bf16.mxu0 0
      %1865 = vmatpush1.bf16.msra.mxu0 %v1826
      %1866 = vmatprep.subr.bf16.mxu0 0
      %1867 = vmatpush1.bf16.msra.mxu0 %v1827
      %1868 = vmatprep.subr.bf16.mxu0 0
      %1869 = vmatpush1.bf16.msra.mxu0 %v1828
      %1870 = vmatprep.subr.bf16.mxu0 0
      %1871 = vmatpush1.bf16.msra.mxu0 %v1829
      %1872 = vmatprep.subr.bf16.mxu0 0
      %1873 = vmatpush1.bf16.msra.mxu0 %v1830
      %1874 = vmatprep.subr.bf16.mxu0 0
      %1875 = vmatpush1.bf16.msra.mxu0 %v1831
      %1876 = vmatprep.subr.bf16.mxu0 0
      %1877 = vmatpush1.bf16.msra.mxu0 %v1832
      %1878 = vmatprep.subr.bf16.mxu0 0
      %1879 = vmatpush1.bf16.msra.mxu0 %v1833
      %1880 = vmatprep.subr.bf16.mxu0 0
      %1881 = vmatpush1.bf16.msra.mxu0 %v1834
      %1882 = vmatprep.subr.bf16.mxu0 0
      %1883 = vmatpush1.bf16.msra.mxu0 %v1835
      %1884 = vmatprep.mubr.bf16.mxu0 %v1704
      %1885 = vmatmul.mubr.bf16.gmra.mrb[0].mxu0 %v1703
      %v1886 = vpop.f32.mrb[0].mxu0
      %v1887 = vadd.f32 %v1754, %v1886
      %v1888 = vpop.f32.mrb[0].mxu0
      %v1889 = vpop.f32.mrb[0].mxu0
      %v1890 = vadd.f32 %v1754, %v1889
      %v1891 = vpop.f32.mrb[0].mxu0
      %1892 = vmatprep.mubr.bf16.mxu0 %v1706
      %1893 = vmatmul.mubr.bf16.gmra.mrb[0].mxu0 %v1705
      %v1894 = vpop.f32.mrb[0].mxu0
      %v1895 = vadd.f32 %v1754, %v1894
      %v1896 = vpop.f32.mrb[0].mxu0
      %v1897 = vpop.f32.mrb[0].mxu0
      %v1898 = vadd.f32 %v1754, %v1897
      %v1899 = vpop.f32.mrb[0].mxu0
      %1900 = vmatprep.mubr.bf16.mxu0 %v1708
      %1901 = vmatmul.mubr.bf16.gmra.mrb[0].mxu0 %v1707
      %v1902 = vpop.f32.mrb[0].mxu0
      %v1903 = vadd.f32 %v1754, %v1902
      %v1904 = vpop.f32.mrb[0].mxu0
      %v1905 = vpop.f32.mrb[0].mxu0
      %v1906 = vadd.f32 %v1754, %v1905
      %v1907 = vpop.f32.mrb[0].mxu0
      %1908 = vmatprep.mubr.bf16.mxu0 %v1710
      %1909 = vmatmul.mubr.bf16.gmra.mrb[0].mxu0 %v1709
      %v1910 = vpop.f32.mrb[0].mxu0
      %v1911 = vadd.f32 %v1754, %v1910
      %v1912 = vpop.f32.mrb[0].mxu0
      %v1913 = vpop.f32.mrb[0].mxu0
      %v1914 = vadd.f32 %v1754, %v1913
      %v1915 = vpop.f32.mrb[0].mxu0
      %1916 = vmatprep.mubr.bf16.mxu0 %v1712
      %1917 = vmatmul.mubr.bf16.gmra.mrb[0].mxu0 %v1711
      %v1918 = vpop.f32.mrb[0].mxu0
      %v1919 = vadd.f32 %v1754, %v1918
      %v1920 = vpop.f32.mrb[0].mxu0
      %v1921 = vpop.f32.mrb[0].mxu0
      %v1922 = vadd.f32 %v1754, %v1921
      %v1923 = vpop.f32.mrb[0].mxu0
      %1924 = vmatprep.mubr.bf16.mxu0 %v1714
      %1925 = vmatmul.mubr.bf16.gmra.mrb[0].mxu0 %v1713
      %v1926 = vpop.f32.mrb[0].mxu0
      %v1927 = vadd.f32 %v1754, %v1926
      %v1928 = vpop.f32.mrb[0].mxu0
      %v1929 = vpop.f32.mrb[0].mxu0
      %v1930 = vadd.f32 %v1754, %v1929
      %v1931 = vpop.f32.mrb[0].mxu0
      %1932 = vmatprep.mubr.bf16.mxu0 %v1716
      %1933 = vmatmul.mubr.bf16.gmra.mrb[0].mxu0 %v1715
      %v1934 = vpop.f32.mrb[0].mxu0
      %v1935 = vadd.f32 %v1754, %v1934
      %v1936 = vpop.f32.mrb[0].mxu0
      %v1937 = vpop.f32.mrb[0].mxu0
      %v1938 = vadd.f32 %v1754, %v1937
      %v1939 = vpop.f32.mrb[0].mxu0
      %1940 = vdwg.mxu0
      %v1941 = vmax.f32 %v1887, 0.0
      %v1942 = vmax.f32 %v1890, 0.0
      %v1943 = vmax.f32 %v1895, 0.0
      %v1944 = vmax.f32 %v1898, 0.0
      %v1945 = vmax.f32 %v1903, 0.0
      %v1946 = vmax.f32 %v1906, 0.0
      %v1947 = vmax.f32 %v1911, 0.0
      %v1948 = vmax.f32 %v1914, 0.0
      %v1949 = vmax.f32 %v1919, 0.0
      %v1950 = vmax.f32 %v1922, 0.0
      %v1951 = vmax.f32 %v1927, 0.0
      %v1952 = vmax.f32 %v1930, 0.0
      %v1953 = vmax.f32 %v1935, 0.0
      %v1954 = vmax.f32 %v1938, 0.0
      %v1955 = vpack.c.bf16 %v1942, %v1941
      %v1956 = vpack.c.bf16 %v1944, %v1943
      %v1957 = vpack.c.bf16 %v1946, %v1945
      %v1958 = vpack.c.bf16 %v1948, %v1947
      %v1959 = vpack.c.bf16 %v1950, %v1949
      %v1960 = vpack.c.bf16 %v1952, %v1951
      %v1961 = vpack.c.bf16 %v1954, %v1953
      %v1962 = vld [vmem:[%s5] sm:$0xf]
      %v1963 = vld [vmem:[%s5 + $0x4] sm:$0xf]
      %v1964 = vld [vmem:[%s5 + $0x8] sm:$0xf]
      %v1965 = vld [vmem:[%s5 + $0xc] sm:$0xf]
      %v1966 = vld [vmem:[%s5 + $0x10] sm:$0xf]
      %v1967 = vld [vmem:[%s5 + $0x14] sm:$0xf]
      %v1968 = vld [vmem:[%s5 + $0x18] sm:$0xf]
      %v1969 = vld [vmem:[%s5 + $0x1c] sm:$0xf]
      %v1970 = vld [vmem:[%s5 + $0x20] sm:$0xf]
      %v1971 = vld [vmem:[%s5 + $0x24] sm:$0xf]
      %v1972 = vld [vmem:[%s5 + $0x28] sm:$0xf]
      %v1973 = vld [vmem:[%s5 + $0x2c] sm:$0xf]
      %v1974 = vld [vmem:[%s5 + $0x30] sm:$0xf]
      %v1975 = vld [vmem:[%s5 + $0x34] sm:$0xf]
      %v1976 = vld [vmem:[%s5 + $0x38] sm:$0xf]
      %v1977 = vld [vmem:[%s5 + $0x3c] sm:$0xf]
      %v1978 = vld [vmem:[%s6] sm:$0x1]
      %v1980 = vlaneseq
      %v1981 = vshrl.u32 %v1980, 7
      %v1982 = vsub.s32 0, %v1981
      %v1983 = vrot.slane %v1978, %v1982
      %v2001 = vunpack.c.l.b16 %v1962
      %v2002 = vunpack.c.l.b16 %v1963
      %v2003 = vunpack.c.l.b16 %v1964
      %v2004 = vunpack.c.l.b16 %v1965
      %v2005 = vunpack.c.l.b16 %v1966
      %v2006 = vunpack.c.l.b16 %v1967
      %v2007 = vunpack.c.l.b16 %v1968
      %v2008 = vunpack.c.l.b16 %v1969
      %v2009 = vunpack.c.l.b16 %v1970
      %v2010 = vunpack.c.l.b16 %v1971
      %v2011 = vunpack.c.l.b16 %v1972
      %v2012 = vunpack.c.l.b16 %v1973
      %v2013 = vunpack.c.l.b16 %v1974
      %v2014 = vunpack.c.l.b16 %v1975
      %v2015 = vunpack.c.l.b16 %v1976
      %v2016 = vunpack.c.l.b16 %v1977
      %v2017 = vpack.c.b16 %v2002, %v2001
      %v2018 = vpack.c.b16 %v2004, %v2003
      %v2019 = vpack.c.b16 %v2006, %v2005
      %v2020 = vpack.c.b16 %v2008, %v2007
      %v2021 = vpack.c.b16 %v2010, %v2009
      %v2022 = vpack.c.b16 %v2012, %v2011
      %v2023 = vpack.c.b16 %v2014, %v2013
      %v2024 = vpack.c.b16 %v2016, %v2015
      %2033 = vmatprep.subr.bf16.mxu0 0
      %2034 = vmatpush1.bf16.msra.mxu0 %v2017
      %2035 = vmatprep.subr.bf16.mxu0 0
      %2036 = vmatpush1.bf16.msra.mxu0 %v2018
      %2037 = vmatprep.subr.bf16.mxu0 0
      %2038 = vmatpush1.bf16.msra.mxu0 %v2019
      %2039 = vmatprep.subr.bf16.mxu0 0
      %2040 = vmatpush1.bf16.msra.mxu0 %v2020
      %2041 = vmatprep.subr.bf16.mxu0 0
      %2042 = vmatpush1.bf16.msra.mxu0 %v2021
      %2043 = vmatprep.subr.bf16.mxu0 0
      %2044 = vmatpush1.bf16.msra.mxu0 %v2022
      %2045 = vmatprep.subr.bf16.mxu0 0
      %2046 = vmatpush1.bf16.msra.mxu0 %v2023
      %2047 = vmatprep.subr.bf16.mxu0 0
      %2048 = vmatpush1.bf16.msra.mxu0 %v2024
      %2049 = vmatprep.subr.bf16.mxu0 0
      %2050 = vmatpush1.bf16.msra.mxu0 0
      %2051 = vmatprep.subr.bf16.mxu0 0
      %2052 = vmatpush1.bf16.msra.mxu0 0
      %2053 = vmatprep.subr.bf16.mxu0 0
      %2054 = vmatpush1.bf16.msra.mxu0 0
      %2055 = vmatprep.subr.bf16.mxu0 0
      %2056 = vmatpush1.bf16.msra.mxu0 0
      %2057 = vmatprep.subr.bf16.mxu0 0
      %2058 = vmatpush1.bf16.msra.mxu0 0
      %2059 = vmatprep.subr.bf16.mxu0 0
      %2060 = vmatpush1.bf16.msra.mxu0 0
      %2061 = vmatprep.subr.bf16.mxu0 0
      %2062 = vmatpush1.bf16.msra.mxu0 0
      %2063 = vmatprep.subr.bf16.mxu0 0
      %2064 = vmatpush1.bf16.msra.mxu0 0
      %2065 = vmatprep.mubr.bf16.mxu0 0
      %2066 = vmatmul.mubr.bf16.gmra.mrb[0].mxu0 %v1955
      %v2067 = vpop.f32.mrb[0].mxu0
      %v2068 = vadd.f32 %v1983, %v2067
      %v2069 = vpop.f32.mrb[0].mxu0
      %v2070 = vpop.f32.mrb[0].mxu0
      %v2071 = vadd.f32 %v1983, %v2070
      %v2072 = vpop.f32.mrb[0].mxu0
      %2073 = vmatprep.mubr.bf16.mxu0 0
      %2074 = vmatmul.mubr.bf16.gmra.mrb[0].mxu0 %v1956
      %v2075 = vpop.f32.mrb[0].mxu0
      %v2076 = vadd.f32 %v1983, %v2075
      %v2077 = vpop.f32.mrb[0].mxu0
      %v2078 = vpop.f32.mrb[0].mxu0
      %v2079 = vadd.f32 %v1983, %v2078
      %v2080 = vpop.f32.mrb[0].mxu0
      %2081 = vmatprep.mubr.bf16.mxu0 0
      %2082 = vmatmul.mubr.bf16.gmra.mrb[0].mxu0 %v1957
      %v2083 = vpop.f32.mrb[0].mxu0
      %v2084 = vadd.f32 %v1983, %v2083
      %v2085 = vpop.f32.mrb[0].mxu0
      %v2086 = vpop.f32.mrb[0].mxu0
      %v2087 = vadd.f32 %v1983, %v2086
      %v2088 = vpop.f32.mrb[0].mxu0
      %2089 = vmatprep.mubr.bf16.mxu0 0
      %2090 = vmatmul.mubr.bf16.gmra.mrb[0].mxu0 %v1958
      %v2091 = vpop.f32.mrb[0].mxu0
      %v2092 = vadd.f32 %v1983, %v2091
      %v2093 = vpop.f32.mrb[0].mxu0
      %v2094 = vpop.f32.mrb[0].mxu0
      %v2095 = vadd.f32 %v1983, %v2094
      %v2096 = vpop.f32.mrb[0].mxu0
      %2097 = vmatprep.mubr.bf16.mxu0 0
      %2098 = vmatmul.mubr.bf16.gmra.mrb[0].mxu0 %v1959
      %v2099 = vpop.f32.mrb[0].mxu0
      %v2100 = vadd.f32 %v1983, %v2099
      %v2101 = vpop.f32.mrb[0].mxu0
      %v2102 = vpop.f32.mrb[0].mxu0
      %v2103 = vadd.f32 %v1983, %v2102
      %v2104 = vpop.f32.mrb[0].mxu0
      %2105 = vmatprep.mubr.bf16.mxu0 0
      %2106 = vmatmul.mubr.bf16.gmra.mrb[0].mxu0 %v1960
      %v2107 = vpop.f32.mrb[0].mxu0
      %v2108 = vadd.f32 %v1983, %v2107
      %v2109 = vpop.f32.mrb[0].mxu0
      %v2110 = vpop.f32.mrb[0].mxu0
      %v2111 = vadd.f32 %v1983, %v2110
      %v2112 = vpop.f32.mrb[0].mxu0
      %2113 = vmatprep.mubr.bf16.mxu0 0
      %2114 = vmatmul.mubr.bf16.gmra.mrb[0].mxu0 %v1961
      %v2115 = vpop.f32.mrb[0].mxu0
      %v2116 = vadd.f32 %v1983, %v2115
      %v2117 = vpop.f32.mrb[0].mxu0
      %v2118 = vpop.f32.mrb[0].mxu0
      %v2119 = vadd.f32 %v1983, %v2118
      %v2120 = vpop.f32.mrb[0].mxu0
      %2121 = vdwg.mxu0
      %v2122 = vmax.f32 %v2068, 0.0
      %v2123 = vmax.f32 %v2071, 0.0
      %v2124 = vmax.f32 %v2076, 0.0
      %v2125 = vmax.f32 %v2079, 0.0
      %v2126 = vmax.f32 %v2084, 0.0
      %v2127 = vmax.f32 %v2087, 0.0
      %v2128 = vmax.f32 %v2092, 0.0
      %v2129 = vmax.f32 %v2095, 0.0
      %v2130 = vmax.f32 %v2100, 0.0
      %v2131 = vmax.f32 %v2103, 0.0
      %v2132 = vmax.f32 %v2108, 0.0
      %v2133 = vmax.f32 %v2111, 0.0
      %v2134 = vmax.f32 %v2116, 0.0
      %v2135 = vmax.f32 %v2119, 0.0
      %v2136 = vpack.c.bf16 %v2123, %v2122
      %v2137 = vpack.c.bf16 %v2125, %v2124
      %v2138 = vpack.c.bf16 %v2127, %v2126
      %v2139 = vpack.c.bf16 %v2129, %v2128
      %v2140 = vpack.c.bf16 %v2131, %v2130
      %v2141 = vpack.c.bf16 %v2133, %v2132
      %v2142 = vpack.c.bf16 %v2135, %v2134
      %v2143 = vld [vmem:[%s7] sm:$0xf]
      %v2144 = vld [vmem:[%s7 + $0x4] sm:$0xf]
      %v2145 = vld [vmem:[%s7 + $0x8] sm:$0xf]
      %v2146 = vld [vmem:[%s7 + $0xc] sm:$0xf]
      %v2147 = vld [vmem:[%s7 + $0x10] sm:$0xf]
      %v2148 = vld [vmem:[%s7 + $0x14] sm:$0xf]
      %v2149 = vld [vmem:[%s7 + $0x18] sm:$0xf]
      %v2150 = vld [vmem:[%s7 + $0x1c] sm:$0xf]
      %v2151 = vld [vmem:[%s8] sm:$0x1]
      %v2153 = vlaneseq
      %v2154 = vshrl.u32 %v2153, 7
      %v2155 = vsub.s32 0, %v2154
      %v2156 = vrot.slane %v2151, %v2155
      %v2166 = vunpack.c.l.b16 %v2143
      %v2167 = vunpack.c.l.b16 %v2144
      %v2168 = vunpack.c.l.b16 %v2145
      %v2169 = vunpack.c.l.b16 %v2146
      %v2170 = vunpack.c.l.b16 %v2147
      %v2171 = vunpack.c.l.b16 %v2148
      %v2172 = vunpack.c.l.b16 %v2149
      %v2173 = vunpack.c.l.b16 %v2150
      %v2174 = vpack.c.b16 %v2167, %v2166
      %v2175 = vpack.c.b16 %v2169, %v2168
      %v2176 = vpack.c.b16 %v2171, %v2170
      %v2177 = vpack.c.b16 %v2173, %v2172
      %vm2182 = vcmask 523264
      %v2184 = vsel %vm2182, %v2136, 0
      %v2187 = vsel %vm2182, %v2137, 0
      %v2190 = vsel %vm2182, %v2138, 0
      %v2193 = vsel %vm2182, %v2139, 0
      %v2196 = vsel %vm2182, %v2140, 0
      %v2199 = vsel %vm2182, %v2141, 0
      %v2202 = vsel %vm2182, %v2142, 0
      %2204 = vmatprep.subr.bf16.mxu0 0
      %2205 = vmatpush1.bf16.msra.mxu0 %v2174
      %2206 = vmatprep.subr.bf16.mxu0 0
      %2207 = vmatpush1.bf16.msra.mxu0 %v2175
      %2208 = vmatprep.subr.bf16.mxu0 0
      %2209 = vmatpush1.bf16.msra.mxu0 %v2176
      %2210 = vmatprep.subr.bf16.mxu0 0
      %2211 = vmatpush1.bf16.msra.mxu0 %v2177
      %2212 = vmatprep.subr.bf16.mxu0 0
      %2213 = vmatpush1.bf16.msra.mxu0 0
      %2214 = vmatprep.subr.bf16.mxu0 0
      %2215 = vmatpush1.bf16.msra.mxu0 0
      %2216 = vmatprep.subr.bf16.mxu0 0
      %2217 = vmatpush1.bf16.msra.mxu0 0
      %2218 = vmatprep.subr.bf16.mxu0 0
      %2219 = vmatpush1.bf16.msra.mxu0 0
      %2220 = vmatprep.subr.bf16.mxu0 0
      %2221 = vmatpush1.bf16.msra.mxu0 0
      %2222 = vmatprep.subr.bf16.mxu0 0
      %2223 = vmatpush1.bf16.msra.mxu0 0
      %2224 = vmatprep.subr.bf16.mxu0 0
      %2225 = vmatpush1.bf16.msra.mxu0 0
      %2226 = vmatprep.subr.bf16.mxu0 0
      %2227 = vmatpush1.bf16.msra.mxu0 0
      %2228 = vmatprep.subr.bf16.mxu0 0
      %2229 = vmatpush1.bf16.msra.mxu0 0
      %2230 = vmatprep.subr.bf16.mxu0 0
      %2231 = vmatpush1.bf16.msra.mxu0 0
      %2232 = vmatprep.subr.bf16.mxu0 0
      %2233 = vmatpush1.bf16.msra.mxu0 0
      %2234 = vmatprep.subr.bf16.mxu0 0
      %2235 = vmatpush1.bf16.msra.mxu0 0
      %2236 = vmatprep.mubr.bf16.mxu0 0
      %2237 = vmatmul.mubr.bf16.gmra.mrb[0].mxu0 %v2184
      %v2238 = vpop.f32.mrb[0].mxu0
      %v2239 = vadd.f32 %v2156, %v2238
      %v2240 = vpop.f32.mrb[0].mxu0
      %v2241 = vpop.f32.mrb[0].mxu0
      %v2242 = vadd.f32 %v2156, %v2241
      %v2243 = vpop.f32.mrb[0].mxu0
      %2244 = vmatprep.mubr.bf16.mxu0 0
      %2245 = vmatmul.mubr.bf16.gmra.mrb[0].mxu0 %v2187
      %v2246 = vpop.f32.mrb[0].mxu0
      %v2247 = vadd.f32 %v2156, %v2246
      %v2248 = vpop.f32.mrb[0].mxu0
      %v2249 = vpop.f32.mrb[0].mxu0
      %v2250 = vadd.f32 %v2156, %v2249
      %v2251 = vpop.f32.mrb[0].mxu0
      %2252 = vmatprep.mubr.bf16.mxu0 0
      %2253 = vmatmul.mubr.bf16.gmra.mrb[0].mxu0 %v2190
      %v2254 = vpop.f32.mrb[0].mxu0
      %v2255 = vadd.f32 %v2156, %v2254
      %v2256 = vpop.f32.mrb[0].mxu0
      %v2257 = vpop.f32.mrb[0].mxu0
      %v2258 = vadd.f32 %v2156, %v2257
      %v2259 = vpop.f32.mrb[0].mxu0
      %2260 = vmatprep.mubr.bf16.mxu0 0
      %2261 = vmatmul.mubr.bf16.gmra.mrb[0].mxu0 %v2193
      %v2262 = vpop.f32.mrb[0].mxu0
      %v2263 = vadd.f32 %v2156, %v2262
      %v2264 = vpop.f32.mrb[0].mxu0
      %v2265 = vpop.f32.mrb[0].mxu0
      %v2266 = vadd.f32 %v2156, %v2265
      %v2267 = vpop.f32.mrb[0].mxu0
      %2268 = vmatprep.mubr.bf16.mxu0 0
      %2269 = vmatmul.mubr.bf16.gmra.mrb[0].mxu0 %v2196
      %v2270 = vpop.f32.mrb[0].mxu0
      %v2271 = vadd.f32 %v2156, %v2270
      %v2272 = vpop.f32.mrb[0].mxu0
      %v2273 = vpop.f32.mrb[0].mxu0
      %v2274 = vadd.f32 %v2156, %v2273
      %v2275 = vpop.f32.mrb[0].mxu0
      %2276 = vmatprep.mubr.bf16.mxu0 0
      %2277 = vmatmul.mubr.bf16.gmra.mrb[0].mxu0 %v2199
      %v2278 = vpop.f32.mrb[0].mxu0
      %v2279 = vadd.f32 %v2156, %v2278
      %v2280 = vpop.f32.mrb[0].mxu0
      %v2281 = vpop.f32.mrb[0].mxu0
      %v2282 = vadd.f32 %v2156, %v2281
      %v2283 = vpop.f32.mrb[0].mxu0
      %2284 = vmatprep.mubr.bf16.mxu0 0
      %2285 = vmatmul.mubr.bf16.gmra.mrb[0].mxu0 %v2202
      %v2286 = vpop.f32.mrb[0].mxu0
      %v2287 = vadd.f32 %v2156, %v2286
      %v2288 = vpop.f32.mrb[0].mxu0
      %v2289 = vpop.f32.mrb[0].mxu0
      %v2290 = vadd.f32 %v2156, %v2289
      %v2291 = vpop.f32.mrb[0].mxu0
      %2292 = vdwg.mxu0
      %2293 = vmax.xlane.f32.xlu0 %v2239
      %v2294 = vpop.xlane.xlu0 %2293
      %2295 = vmax.xlane.f32.xlu0 %v2242
      %v2296 = vpop.xlane.xlu0 %2295
      %2297 = vmax.xlane.f32.xlu0 %v2247
      %v2298 = vpop.xlane.xlu0 %2297
      %2299 = vmax.xlane.f32.xlu0 %v2250
      %v2300 = vpop.xlane.xlu0 %2299
      %2301 = vmax.xlane.f32.xlu0 %v2255
      %v2302 = vpop.xlane.xlu0 %2301
      %2303 = vmax.xlane.f32.xlu0 %v2258
      %v2304 = vpop.xlane.xlu0 %2303
      %2305 = vmax.xlane.f32.xlu0 %v2263
      %v2306 = vpop.xlane.xlu0 %2305
      %2307 = vmax.xlane.f32.xlu0 %v2266
      %v2308 = vpop.xlane.xlu0 %2307
      %2309 = vmax.xlane.f32.xlu0 %v2271
      %v2310 = vpop.xlane.xlu0 %2309
      %2311 = vmax.xlane.f32.xlu0 %v2274
      %v2312 = vpop.xlane.xlu0 %2311
      %2313 = vmax.xlane.f32.xlu0 %v2279
      %v2314 = vpop.xlane.xlu0 %2313
      %2315 = vmax.xlane.f32.xlu0 %v2282
      %v2316 = vpop.xlane.xlu0 %2315
      %2317 = vmax.xlane.f32.xlu0 %v2287
      %v2318 = vpop.xlane.xlu0 %2317
      %2319 = vmax.xlane.f32.xlu0 %v2290
      %v2320 = vpop.xlane.xlu0 %2319
      %v2321 = vsub.f32 %v2239, %v2294
      %v2322 = vsub.f32 %v2242, %v2296
      %v2323 = vsub.f32 %v2247, %v2298
      %v2324 = vsub.f32 %v2250, %v2300
      %v2325 = vsub.f32 %v2255, %v2302
      %v2326 = vsub.f32 %v2258, %v2304
      %v2327 = vsub.f32 %v2263, %v2306
      %v2328 = vsub.f32 %v2266, %v2308
      %v2329 = vsub.f32 %v2271, %v2310
      %v2330 = vsub.f32 %v2274, %v2312
      %v2331 = vsub.f32 %v2279, %v2314
      %v2332 = vsub.f32 %v2282, %v2316
      %v2333 = vsub.f32 %v2287, %v2318
      %v2334 = vsub.f32 %v2290, %v2320
      %v2335 = vmul.f32 %v2321, 1.442695
      %v2336 = vpow.pop %v2335
      %v2337 = vmul.f32 %v2322, 1.442695
      %v2338 = vpow.pop %v2337
      %v2339 = vmul.f32 %v2323, 1.442695
      %v2340 = vpow.pop %v2339
      %v2341 = vmul.f32 %v2324, 1.442695
      %v2342 = vpow.pop %v2341
      %v2343 = vmul.f32 %v2325, 1.442695
      %v2344 = vpow.pop %v2343
      %v2345 = vmul.f32 %v2326, 1.442695
      %v2346 = vpow.pop %v2345
      %v2347 = vmul.f32 %v2327, 1.442695
      %v2348 = vpow.pop %v2347
      %v2349 = vmul.f32 %v2328, 1.442695
      %v2350 = vpow.pop %v2349
      %v2351 = vmul.f32 %v2329, 1.442695
      %v2352 = vpow.pop %v2351
      %v2353 = vmul.f32 %v2330, 1.442695
      %v2354 = vpow.pop %v2353
      %v2355 = vmul.f32 %v2331, 1.442695
      %v2356 = vpow.pop %v2355
      %v2357 = vmul.f32 %v2332, 1.442695
      %v2358 = vpow.pop %v2357
      %v2359 = vmul.f32 %v2333, 1.442695
      %v2360 = vpow.pop %v2359
      %v2361 = vmul.f32 %v2334, 1.442695
      %v2362 = vpow.pop %v2361
      %2363 = vadd.xlane.f32.xlu0 %v2336
      %v2364 = vpop.xlane.xlu0 %2363
      %2365 = vadd.xlane.f32.xlu0 %v2338
      %v2366 = vpop.xlane.xlu0 %2365
      %2367 = vadd.xlane.f32.xlu0 %v2340
      %v2368 = vpop.xlane.xlu0 %2367
      %2369 = vadd.xlane.f32.xlu0 %v2342
      %v2370 = vpop.xlane.xlu0 %2369
      %2371 = vadd.xlane.f32.xlu0 %v2344
      %v2372 = vpop.xlane.xlu0 %2371
      %2373 = vadd.xlane.f32.xlu0 %v2346
      %v2374 = vpop.xlane.xlu0 %2373
      %2375 = vadd.xlane.f32.xlu0 %v2348
      %v2376 = vpop.xlane.xlu0 %2375
      %2377 = vadd.xlane.f32.xlu0 %v2350
      %v2378 = vpop.xlane.xlu0 %2377
      %2379 = vadd.xlane.f32.xlu0 %v2352
      %v2380 = vpop.xlane.xlu0 %2379
      %2381 = vadd.xlane.f32.xlu0 %v2354
      %v2382 = vpop.xlane.xlu0 %2381
      %2383 = vadd.xlane.f32.xlu0 %v2356
      %v2384 = vpop.xlane.xlu0 %2383
      %2385 = vadd.xlane.f32.xlu0 %v2358
      %v2386 = vpop.xlane.xlu0 %2385
      %2387 = vadd.xlane.f32.xlu0 %v2360
      %v2388 = vpop.xlane.xlu0 %2387
      %2389 = vadd.xlane.f32.xlu0 %v2362
      %v2390 = vpop.xlane.xlu0 %2389
      %v2391 = vlog2.pop %v2364
      %v2392 = vmul.f32 %v2391, 0.6931472
      %v2393 = vlog2.pop %v2366
      %v2394 = vmul.f32 %v2393, 0.6931472
      %v2395 = vlog2.pop %v2368
      %v2396 = vmul.f32 %v2395, 0.6931472
      %v2397 = vlog2.pop %v2370
      %v2398 = vmul.f32 %v2397, 0.6931472
      %v2399 = vlog2.pop %v2372
      %v2400 = vmul.f32 %v2399, 0.6931472
      %v2401 = vlog2.pop %v2374
      %v2402 = vmul.f32 %v2401, 0.6931472
      %v2403 = vlog2.pop %v2376
      %v2404 = vmul.f32 %v2403, 0.6931472
      %v2405 = vlog2.pop %v2378
      %v2406 = vmul.f32 %v2405, 0.6931472
      %v2407 = vlog2.pop %v2380
      %v2408 = vmul.f32 %v2407, 0.6931472
      %v2409 = vlog2.pop %v2382
      %v2410 = vmul.f32 %v2409, 0.6931472
      %v2411 = vlog2.pop %v2384
      %v2412 = vmul.f32 %v2411, 0.6931472
      %v2413 = vlog2.pop %v2386
      %v2414 = vmul.f32 %v2413, 0.6931472
      %v2415 = vlog2.pop %v2388
      %v2416 = vmul.f32 %v2415, 0.6931472
      %v2417 = vlog2.pop %v2390
      %v2418 = vmul.f32 %v2417, 0.6931472
      %v2419 = vsub.f32 %v2321, %v2392
      %v2420 = vsub.f32 %v2322, %v2394
      %v2421 = vsub.f32 %v2323, %v2396
      %v2422 = vsub.f32 %v2324, %v2398
      %v2423 = vsub.f32 %v2325, %v2400
      %v2424 = vsub.f32 %v2326, %v2402
      %v2425 = vsub.f32 %v2327, %v2404
      %v2426 = vsub.f32 %v2328, %v2406
      %v2427 = vsub.f32 %v2329, %v2408
      %v2428 = vsub.f32 %v2330, %v2410
      %v2429 = vsub.f32 %v2331, %v2412
      %v2430 = vsub.f32 %v2332, %v2414
      %v2431 = vsub.f32 %v2333, %v2416
      %v2432 = vsub.f32 %v2334, %v2418
      %2433 = vst [vmem:[%s337] sm:$0xff] %v2419
      %2434 = vst [vmem:[%s337 + $0x8] sm:$0xff] %v2420
      %2435 = vst [vmem:[%s337 + $0x10] sm:$0xff] %v2421
      %2436 = vst [vmem:[%s337 + $0x18] sm:$0xff] %v2422
      %2437 = vst [vmem:[%s337 + $0x20] sm:$0xff] %v2423
      %2438 = vst [vmem:[%s337 + $0x28] sm:$0xff] %v2424
      %2439 = vst [vmem:[%s337 + $0x30] sm:$0xff] %v2425
      %2440 = vst [vmem:[%s337 + $0x38] sm:$0xff] %v2426
      %2441 = vst [vmem:[%s337 + $0x40] sm:$0xff] %v2427
      %2442 = vst [vmem:[%s337 + $0x48] sm:$0xff] %v2428
      %2443 = vst [vmem:[%s337 + $0x50] sm:$0xff] %v2429
      %2444 = vst [vmem:[%s337 + $0x58] sm:$0xff] %v2430
      %2445 = vst [vmem:[%s337 + $0x60] sm:$0xff] %v2431
      %2446 = vst [vmem:[%s337 + $0x68] sm:$0xff] %v2432
      %s2447 = smul.u32 14, %s20
      %p2448 = scmp.lt.s32.totalorder %s2447, 27
      %s2449 = scalar_select %p2448, %s2447, 27
      %s2450 = smul.addr %s2449, 8
      %s2451 = scalar_lea.vmem %s9, %s2450
      // Predicated region
      $region57: #{mlp_forward.1} parent=55 // pred_check
        %p2452 = pneg %p232
      $region58: #{mlp_forward.1} parent=55 // pred_check_branch
        %2454 = sbr.rel (%p2452) target = $region60
      $region59: #{mlp_forward.1} parent=55 // pred_region
        %s2455 = smul.u32 14, %s20
      $region60: #{mlp_forward.1} parent=55 // pred_fallthru
        _
    $region56: #{mlp_forward.1} parent=5 // pred_fallthru
      _
    %p2456 = scmp.le.s32.totalorder 2, %s15
    // Predicated region
    $region61: #{mlp_forward.1} parent=5 // pred_check
      %p2457 = pneg %p2456
    $region62: #{mlp_forward.1} parent=5 // pred_check_branch
      %2459 = sbr.rel (%p2457) target = $region64
    $region63: #{mlp_forward.1} parent=5 // pred_region
      %s2460 = ssub.s32 %s15, 2
      // Predicated region
      $region65: #{mlp_forward.1} parent=63 // pred_check
        %p2461 = pneg %p238
      $region66: #{mlp_forward.1} parent=63 // pred_check_branch
        %2463 = sbr.rel (%p2461) target = $region68
      $region67: #{mlp_forward.1} parent=63 // pred_region
        %s2464 = smul.u32 14, %s21
        %p2465 = scmp.lt.s32.totalorder %s2464, 27
        %s2466 = scalar_select %p2465, %s2464, 27
        %s2467 = smul.addr %s2466, 8
        %s2468 = scalar_lea.vmem %s9, %s2467
      $region68: #{mlp_forward.1} parent=63 // pred_fallthru
        _
    $region64: #{mlp_forward.1} parent=5 // pred_fallthru
      _
  $region6: #{mlp_forward.1} parent=0 // loop_footer
    %s19 = sadd.s32 1, %s15
  $region7: #{mlp_forward.1} parent=0 // loop_footer_branch
    %14 = sbr.rel target = $region3
  $region8: #{mlp_forward.1} parent=0 // loop_exit
    _

</llo_original>
